<compile_context>
chip_gen: v7x
topology: tpu7x:2x2x1
jax: 0.10.0
libtpu: 0.0.40
codegen_flags: <defaults>
</compile_context>

<pallas_src>
import jax
import jax.numpy as jnp
from jax import lax
from jax.experimental import pallas as pl
from jax.experimental.pallas import tpu as pltpu

# Real model dims (PyTorch defaults)
INPUT_DIM = 9
HIDDEN_DIM = 16
OUTPUT_DIM = 2

# TPU-friendly padded dims
BP = 8      # batch padded to sublane multiple
DP = 128    # input dim padded to lane multiple
HP = 128    # hidden dim padded to lane multiple
OP = 128    # output dim padded to lane multiple


def lstm_dqn_kernel(x_ref, w_ih_ref, w_hh_ref, b_ref, w_fc_ref, b_fc_ref,
                    h0_ref, c0_ref, q_ref, h_ref, c_ref, gx_ref):
    """Single-invocation kernel: whole LSTM recurrence + final FC in VMEM.

    x_ref: (T*BP, DP) time-major padded input.
    gx_ref: (T*BP, 4*HP) VMEM scratch holding the hoisted input projection.
    """
    T = x_ref.shape[0] // BP

    # (1) Hoisted input projection + bias: one well-shaped streaming matmul,
    # completely off the recurrent critical path.
    gx_ref[...] = (jnp.dot(x_ref[...], w_ih_ref[...],
                           preferred_element_type=jnp.float32) + b_ref[...])

    def sig(z):
        # sigmoid(z) = 0.5 * tanh(0.5 * z) + 0.5 : one EUP push instead of exp+recip.
        return 0.5 * jnp.tanh(0.5 * z) + 0.5

    # (2) Recurrence with h/c carried in registers (no VMEM round-trip per step).
    def step(t, carry):
        h, c = carry
        row = pl.multiple_of(t * BP, BP)
        gates = gx_ref[pl.ds(row, BP), :] + jnp.dot(
            h, w_hh_ref[...], preferred_element_type=jnp.float32)   # (BP, 4*HP)
        i_g = sig(gates[:, 0 * HP:1 * HP])
        f_g = sig(gates[:, 1 * HP:2 * HP])
        g_g = jnp.tanh(gates[:, 2 * HP:3 * HP])
        o_g = sig(gates[:, 3 * HP:4 * HP])
        c_new = f_g * c + i_g * g_g
        h_new = o_g * jnp.tanh(c_new)
        return h_new, c_new

    # T is tiny (8) here: full unroll gives the LLO scheduler visibility.
    # For long sequences, switch to a bounded unroll (e.g. unroll=8).
    h, c = lax.fori_loop(0, T, step, (h0_ref[...], c0_ref[...]), unroll=True)

    h_ref[...] = h
    c_ref[...] = c
    q_ref[...] = (jnp.dot(h, w_fc_ref[...],
                          preferred_element_type=jnp.float32) + b_fc_ref[...])


def init_params(key):
    """Deterministic init matching PyTorch shapes (uniform +/- 1/sqrt(H))."""
    bound = 1.0 / float(jnp.sqrt(jnp.float32(HIDDEN_DIM)))
    ks = jax.random.split(key, 6)
    u = lambda k, shape: jax.random.uniform(k, shape, jnp.float32, -bound, bound)
    w_ih = u(ks[0], (4 * HIDDEN_DIM, INPUT_DIM))
    w_hh = u(ks[1], (4 * HIDDEN_DIM, HIDDEN_DIM))
    b_ih = u(ks[2], (4 * HIDDEN_DIM,))
    b_hh = u(ks[3], (4 * HIDDEN_DIM,))
    w_fc = u(ks[4], (OUTPUT_DIM, HIDDEN_DIM))
    b_fc = u(ks[5], (OUTPUT_DIM,))
    return w_ih, w_hh, b_ih, b_hh, w_fc, b_fc


def pad_params(w_ih, w_hh, b_ih, b_hh, w_fc, b_fc):
    """Transpose + zero-pad weights into MXU-friendly padded slabs."""
    w_ih_p = jnp.zeros((DP, 4 * HP), jnp.float32)
    w_hh_p = jnp.zeros((HP, 4 * HP), jnp.float32)
    b_p = jnp.zeros((1, 4 * HP), jnp.float32)
    H = HIDDEN_DIM
    for g in range(4):
        w_ih_p = w_ih_p.at[:INPUT_DIM, g * HP:g * HP + H].set(
            w_ih[g * H:(g + 1) * H, :].T)
        w_hh_p = w_hh_p.at[:H, g * HP:g * HP + H].set(
            w_hh[g * H:(g + 1) * H, :].T)
        b_p = b_p.at[0, g * HP:g * HP + H].set(
            b_ih[g * H:(g + 1) * H] + b_hh[g * H:(g + 1) * H])
    w_fc_p = jnp.zeros((HP, OP), jnp.float32).at[:H, :OUTPUT_DIM].set(w_fc.T)
    b_fc_p = jnp.zeros((1, OP), jnp.float32).at[0, :OUTPUT_DIM].set(b_fc)
    return w_ih_p, w_hh_p, b_p, w_fc_p, b_fc_p


def lstm_dqn_forward(x, padded_params, h_c=None):
    """x: (B, T, 9) float32. Returns (qvals (B,2), (h (1,B,16), c (1,B,16)))."""
    B, T, D = x.shape
    w_ih_p, w_hh_p, b_p, w_fc_p, b_fc_p = padded_params

    # Time-major, padded, then flattened to (T*BP, DP) so the hoisted input
    # projection is a single 2-D matmul in the kernel.
    x_tm = jnp.transpose(x, (1, 0, 2))                      # (T, B, D)
    x_pad = jnp.zeros((T, BP, DP), jnp.float32).at[:, :B, :D].set(x_tm)
    x_flat = x_pad.reshape(T * BP, DP)

    if h_c is None:
        h0 = jnp.zeros((1, B, HIDDEN_DIM), jnp.float32)
        c0 = jnp.zeros((1, B, HIDDEN_DIM), jnp.float32)
    else:
        h0, c0 = h_c
    h0_p = jnp.zeros((BP, HP), jnp.float32).at[:B, :HIDDEN_DIM].set(h0[0])
    c0_p = jnp.zeros((BP, HP), jnp.float32).at[:B, :HIDDEN_DIM].set(c0[0])

    vmem = pl.BlockSpec(memory_space=pltpu.MemorySpace.VMEM)
    # TODO(synk): for large replay batches, grow BP (multiple of 8) and on v7x add a
    # "parallel" batch grid axis so both TensorCores get their own batch slice.
    q_p, h_p, c_p = pl.pallas_call(
        lstm_dqn_kernel,
        out_shape=(jax.ShapeDtypeStruct((BP, OP), jnp.float32),
                   jax.ShapeDtypeStruct((BP, HP), jnp.float32),
                   jax.ShapeDtypeStruct((BP, HP), jnp.float32)),
        in_specs=[vmem] * 8,
        out_specs=(vmem, vmem, vmem),
        scratch_shapes=[pltpu.VMEM((T * BP, 4 * HP), jnp.float32)],
    )(x_flat, w_ih_p, w_hh_p, b_p, w_fc_p, b_fc_p, h0_p, c0_p)

    qvals = q_p[:B, :OUTPUT_DIM]
    h = h_p[:B, :HIDDEN_DIM][None, :, :]
    c = c_p[:B, :HIDDEN_DIM][None, :, :]
    return qvals, (h, c)


def lstm_dqn_ref(x, w_ih, w_hh, b_ih, b_hh, w_fc, b_fc):
    """Pure-JAX reference (same math as torch.nn.LSTM + Linear, zero init state)."""
    B, T, _ = x.shape
    H = HIDDEN_DIM
    h = jnp.zeros((B, H), jnp.float32)
    c = jnp.zeros((B, H), jnp.float32)
    for t in range(T):
        gates = x[:, t, :] @ w_ih.T + b_ih + h @ w_hh.T + b_hh
        i = jax.nn.sigmoid(gates[:, 0:H])
        f = jax.nn.sigmoid(gates[:, H:2 * H])
        g = jnp.tanh(gates[:, 2 * H:3 * H])
        o = jax.nn.sigmoid(gates[:, 3 * H:4 * H])
        c = f * c + i * g
        h = o * jnp.tanh(c)
    q = h @ w_fc.T + b_fc
    return q, (h[None], c[None])


if __name__ == "__main__":
    key = jax.random.PRNGKey(0)
    k_param, k_idx = jax.random.split(key)

    # Deterministic parameters
    raw_params = init_params(k_param)
    padded_params = pad_params(*raw_params)

    # Small deterministic input: batch=2, seq=8, one-hot 9D states
    B, T = 2, 8
    idx = jax.random.randint(k_idx, (B, T), 0, INPUT_DIM)
    x = jax.nn.one_hot(idx, INPUT_DIM, dtype=jnp.float32)   # (2, 8, 9)

    qvals, (h, c) = lstm_dqn_forward(x, padded_params)
    qvals = jax.block_until_ready(qvals)
    h = jax.block_until_ready(h)
    c = jax.block_until_ready(c)

    # Correctness check against pure-JAX reference
    q_ref, (h_ref, c_ref) = lstm_dqn_ref(x, *raw_params)
    assert qvals.shape == (B, OUTPUT_DIM)
    assert h.shape == (1, B, HIDDEN_DIM) and c.shape == (1, B, HIDDEN_DIM)
    assert jnp.allclose(qvals, q_ref, atol=1e-5, rtol=1e-5)
    assert jnp.allclose(h, h_ref, atol=1e-5, rtol=1e-5)
    assert jnp.allclose(c, c_ref, atol=1e-5, rtol=1e-5)

    print("KERNEL_OK")
</pallas_src>

<mosaic_0001>
module attributes {stable_mosaic.version = 11 : i64} {
  func.func @lstm_dqn_kernel(%arg0: memref<64x128xf32, #tpu.memory_space<vmem>>, %arg1: memref<128x512xf32, #tpu.memory_space<vmem>>, %arg2: memref<128x512xf32, #tpu.memory_space<vmem>>, %arg3: memref<1x512xf32, #tpu.memory_space<vmem>>, %arg4: memref<128x128xf32, #tpu.memory_space<vmem>>, %arg5: memref<1x128xf32, #tpu.memory_space<vmem>>, %arg6: memref<8x128xf32, #tpu.memory_space<vmem>>, %arg7: memref<8x128xf32, #tpu.memory_space<vmem>>, %arg8: memref<8x128xf32, #tpu.memory_space<vmem>>, %arg9: memref<8x128xf32, #tpu.memory_space<vmem>>, %arg10: memref<8x128xf32, #tpu.memory_space<vmem>>, %arg11: memref<64x512xf32, #tpu.memory_space<vmem>>) attributes {dimension_semantics = [], scalar_prefetch = 0 : i64, scratch_operands = 1 : i64, tpu.core_type = #tpu.core_type<tc>} {
    %c0 = arith.constant 0 : index
    %c0_0 = arith.constant 0 : index
    %0 = vector.load %arg0[%c0, %c0_0] : memref<64x128xf32, #tpu.memory_space<vmem>>, vector<64x128xf32>
    %c0_1 = arith.constant 0 : index
    %c0_2 = arith.constant 0 : index
    %1 = vector.load %arg1[%c0_1, %c0_2] : memref<128x512xf32, #tpu.memory_space<vmem>>, vector<128x512xf32>
    %cst = arith.constant dense<0.000000e+00> : vector<64x512xf32>
    %2 = tpu.matmul %0, %1, %cst {dimension_numbers = #tpu.dot_dimension_numbers<[1], [0], [0], [1], [0, 0, 1, 1], [], []>} : vector<64x128xf32>, vector<128x512xf32>, vector<64x512xf32> -> vector<64x512xf32>
    %c0_3 = arith.constant 0 : index
    %c0_4 = arith.constant 0 : index
    %3 = vector.load %arg3[%c0_3, %c0_4] : memref<1x512xf32, #tpu.memory_space<vmem>>, vector<1x512xf32>
    %4 = vector.broadcast %3 : vector<1x512xf32> to vector<64x512xf32>
    %5 = arith.addf %2, %4 : vector<64x512xf32>
    %c0_5 = arith.constant 0 : index
    %c0_6 = arith.constant 0 : index
    %6 = vector.load %arg11[%c0_5, %c0_6] : memref<64x512xf32, #tpu.memory_space<vmem>>, vector<64x512xf32>
    tpu.vector_store %arg11[%c0_5, %c0_6], %5 {strides = array<i32>} : memref<64x512xf32, #tpu.memory_space<vmem>>, vector<64x512xf32>,
    %c0_7 = arith.constant 0 : index
    %c0_8 = arith.constant 0 : index
    %7 = vector.load %arg6[%c0_7, %c0_8] : memref<8x128xf32, #tpu.memory_space<vmem>>, vector<8x128xf32>
    %c0_9 = arith.constant 0 : index
    %c0_10 = arith.constant 0 : index
    %8 = vector.load %arg7[%c0_9, %c0_10] : memref<8x128xf32, #tpu.memory_space<vmem>>, vector<8x128xf32>
    %c0_i32 = arith.constant 0 : i32
    %c8_i32 = arith.constant 8 : i32
    %9 = arith.muli %c0_i32, %c8_i32 : i32
    %10 = tpu.assume_multiple %9, 8 : i32
    %11 = arith.index_cast %10 : i32 to index
    %c0_11 = arith.constant 0 : index
    %12 = vector.load %arg11[%11, %c0_11] : memref<64x512xf32, #tpu.memory_space<vmem>>, vector<8x512xf32>
    %c0_12 = arith.constant 0 : index
    %c0_13 = arith.constant 0 : index
    %13 = vector.load %arg2[%c0_12, %c0_13] : memref<128x512xf32, #tpu.memory_space<vmem>>, vector<128x512xf32>
    %cst_14 = arith.constant dense<0.000000e+00> : vector<8x512xf32>
    %14 = tpu.matmul %7, %13, %cst_14 {dimension_numbers = #tpu.dot_dimension_numbers<[1], [0], [0], [1], [0, 0, 1, 1], [], []>} : vector<8x128xf32>, vector<128x512xf32>, vector<8x512xf32> -> vector<8x512xf32>
    %15 = arith.addf %12, %14 : vector<8x512xf32>
    %16 = vector.extract_strided_slice %15 {offsets = [0, 0], sizes = [8, 128], strides = [1, 1]} : vector<8x512xf32> to vector<8x128xf32>
    %cst_15 = arith.constant 5.000000e-01 : f32
    %17 = vector.broadcast %cst_15 : f32 to vector<8x128xf32>
    %18 = arith.mulf %17, %16 : vector<8x128xf32>
    %19 = math.tanh %18 : vector<8x128xf32>
    %cst_16 = arith.constant 5.000000e-01 : f32
    %20 = vector.broadcast %cst_16 : f32 to vector<8x128xf32>
    %21 = arith.mulf %20, %19 : vector<8x128xf32>
    %cst_17 = arith.constant 5.000000e-01 : f32
    %22 = vector.broadcast %cst_17 : f32 to vector<8x128xf32>
    %23 = arith.addf %21, %22 : vector<8x128xf32>
    %24 = vector.extract_strided_slice %15 {offsets = [0, 128], sizes = [8, 128], strides = [1, 1]} : vector<8x512xf32> to vector<8x128xf32>
    %cst_18 = arith.constant 5.000000e-01 : f32
    %25 = vector.broadcast %cst_18 : f32 to vector<8x128xf32>
    %26 = arith.mulf %25, %24 : vector<8x128xf32>
    %27 = math.tanh %26 : vector<8x128xf32>
    %cst_19 = arith.constant 5.000000e-01 : f32
    %28 = vector.broadcast %cst_19 : f32 to vector<8x128xf32>
    %29 = arith.mulf %28, %27 : vector<8x128xf32>
    %cst_20 = arith.constant 5.000000e-01 : f32
    %30 = vector.broadcast %cst_20 : f32 to vector<8x128xf32>
    %31 = arith.addf %29, %30 : vector<8x128xf32>
    %32 = vector.extract_strided_slice %15 {offsets = [0, 256], sizes = [8, 128], strides = [1, 1]} : vector<8x512xf32> to vector<8x128xf32>
    %33 = math.tanh %32 : vector<8x128xf32>
    %34 = vector.extract_strided_slice %15 {offsets = [0, 384], sizes = [8, 128], strides = [1, 1]} : vector<8x512xf32> to vector<8x128xf32>
    %cst_21 = arith.constant 5.000000e-01 : f32
    %35 = vector.broadcast %cst_21 : f32 to vector<8x128xf32>
    %36 = arith.mulf %35, %34 : vector<8x128xf32>
    %37 = math.tanh %36 : vector<8x128xf32>
    %cst_22 = arith.constant 5.000000e-01 : f32
    %38 = vector.broadcast %cst_22 : f32 to vector<8x128xf32>
    %39 = arith.mulf %38, %37 : vector<8x128xf32>
    %cst_23 = arith.constant 5.000000e-01 : f32
    %40 = vector.broadcast %cst_23 : f32 to vector<8x128xf32>
    %41 = arith.addf %39, %40 : vector<8x128xf32>
    %42 = arith.mulf %31, %8 : vector<8x128xf32>
    %43 = arith.mulf %23, %33 : vector<8x128xf32>
    %44 = arith.addf %42, %43 : vector<8x128xf32>
    %45 = math.tanh %44 : vector<8x128xf32>
    %46 = arith.mulf %41, %45 : vector<8x128xf32>
    %c1_i32 = arith.constant 1 : i32
    %c8_i32_24 = arith.constant 8 : i32
    %47 = arith.muli %c1_i32, %c8_i32_24 : i32
    %48 = tpu.assume_multiple %47, 8 : i32
    %49 = arith.index_cast %48 : i32 to index
    %c0_25 = arith.constant 0 : index
    %50 = vector.load %arg11[%49, %c0_25] : memref<64x512xf32, #tpu.memory_space<vmem>>, vector<8x512xf32>
    %c0_26 = arith.constant 0 : index
    %c0_27 = arith.constant 0 : index
    %51 = vector.load %arg2[%c0_26, %c0_27] : memref<128x512xf32, #tpu.memory_space<vmem>>, vector<128x512xf32>
    %cst_28 = arith.constant dense<0.000000e+00> : vector<8x512xf32>
    %52 = tpu.matmul %46, %51, %cst_28 {dimension_numbers = #tpu.dot_dimension_numbers<[1], [0], [0], [1], [0, 0, 1, 1], [], []>} : vector<8x128xf32>, vector<128x512xf32>, vector<8x512xf32> -> vector<8x512xf32>
    %53 = arith.addf %50, %52 : vector<8x512xf32>
    %54 = vector.extract_strided_slice %53 {offsets = [0, 0], sizes = [8, 128], strides = [1, 1]} : vector<8x512xf32> to vector<8x128xf32>
    %cst_29 = arith.constant 5.000000e-01 : f32
    %55 = vector.broadcast %cst_29 : f32 to vector<8x128xf32>
    %56 = arith.mulf %55, %54 : vector<8x128xf32>
    %57 = math.tanh %56 : vector<8x128xf32>
    %cst_30 = arith.constant 5.000000e-01 : f32
    %58 = vector.broadcast %cst_30 : f32 to vector<8x128xf32>
    %59 = arith.mulf %58, %57 : vector<8x128xf32>
    %cst_31 = arith.constant 5.000000e-01 : f32
    %60 = vector.broadcast %cst_31 : f32 to vector<8x128xf32>
    %61 = arith.addf %59, %60 : vector<8x128xf32>
    %62 = vector.extract_strided_slice %53 {offsets = [0, 128], sizes = [8, 128], strides = [1, 1]} : vector<8x512xf32> to vector<8x128xf32>
    %cst_32 = arith.constant 5.000000e-01 : f32
    %63 = vector.broadcast %cst_32 : f32 to vector<8x128xf32>
    %64 = arith.mulf %63, %62 : vector<8x128xf32>
    %65 = math.tanh %64 : vector<8x128xf32>
    %cst_33 = arith.constant 5.000000e-01 : f32
    %66 = vector.broadcast %cst_33 : f32 to vector<8x128xf32>
    %67 = arith.mulf %66, %65 : vector<8x128xf32>
    %cst_34 = arith.constant 5.000000e-01 : f32
    %68 = vector.broadcast %cst_34 : f32 to vector<8x128xf32>
    %69 = arith.addf %67, %68 : vector<8x128xf32>
    %70 = vector.extract_strided_slice %53 {offsets = [0, 256], sizes = [8, 128], strides = [1, 1]} : vector<8x512xf32> to vector<8x128xf32>
    %71 = math.tanh %70 : vector<8x128xf32>
    %72 = vector.extract_strided_slice %53 {offsets = [0, 384], sizes = [8, 128], strides = [1, 1]} : vector<8x512xf32> to vector<8x128xf32>
    %cst_35 = arith.constant 5.000000e-01 : f32
    %73 = vector.broadcast %cst_35 : f32 to vector<8x128xf32>
    %74 = arith.mulf %73, %72 : vector<8x128xf32>
    %75 = math.tanh %74 : vector<8x128xf32>
    %cst_36 = arith.constant 5.000000e-01 : f32
    %76 = vector.broadcast %cst_36 : f32 to vector<8x128xf32>
    %77 = arith.mulf %76, %75 : vector<8x128xf32>
    %cst_37 = arith.constant 5.000000e-01 : f32
    %78 = vector.broadcast %cst_37 : f32 to vector<8x128xf32>
    %79 = arith.addf %77, %78 : vector<8x128xf32>
    %80 = arith.mulf %69, %44 : vector<8x128xf32>
    %81 = arith.mulf %61, %71 : vector<8x128xf32>
    %82 = arith.addf %80, %81 : vector<8x128xf32>
    %83 = math.tanh %82 : vector<8x128xf32>
    %84 = arith.mulf %79, %83 : vector<8x128xf32>
    %c2_i32 = arith.constant 2 : i32
    %c8_i32_38 = arith.constant 8 : i32
    %85 = arith.muli %c2_i32, %c8_i32_38 : i32
    %86 = tpu.assume_multiple %85, 8 : i32
    %87 = arith.index_cast %86 : i32 to index
    %c0_39 = arith.constant 0 : index
    %88 = vector.load %arg11[%87, %c0_39] : memref<64x512xf32, #tpu.memory_space<vmem>>, vector<8x512xf32>
    %c0_40 = arith.constant 0 : index
    %c0_41 = arith.constant 0 : index
    %89 = vector.load %arg2[%c0_40, %c0_41] : memref<128x512xf32, #tpu.memory_space<vmem>>, vector<128x512xf32>
    %cst_42 = arith.constant dense<0.000000e+00> : vector<8x512xf32>
    %90 = tpu.matmul %84, %89, %cst_42 {dimension_numbers = #tpu.dot_dimension_numbers<[1], [0], [0], [1], [0, 0, 1, 1], [], []>} : vector<8x128xf32>, vector<128x512xf32>, vector<8x512xf32> -> vector<8x512xf32>
    %91 = arith.addf %88, %90 : vector<8x512xf32>
    %92 = vector.extract_strided_slice %91 {offsets = [0, 0], sizes = [8, 128], strides = [1, 1]} : vector<8x512xf32> to vector<8x128xf32>
    %cst_43 = arith.constant 5.000000e-01 : f32
    %93 = vector.broadcast %cst_43 : f32 to vector<8x128xf32>
    %94 = arith.mulf %93, %92 : vector<8x128xf32>
    %95 = math.tanh %94 : vector<8x128xf32>
    %cst_44 = arith.constant 5.000000e-01 : f32
    %96 = vector.broadcast %cst_44 : f32 to vector<8x128xf32>
    %97 = arith.mulf %96, %95 : vector<8x128xf32>
    %cst_45 = arith.constant 5.000000e-01 : f32
    %98 = vector.broadcast %cst_45 : f32 to vector<8x128xf32>
    %99 = arith.addf %97, %98 : vector<8x128xf32>
    %100 = vector.extract_strided_slice %91 {offsets = [0, 128], sizes = [8, 128], strides = [1, 1]} : vector<8x512xf32> to vector<8x128xf32>
    %cst_46 = arith.constant 5.000000e-01 : f32
    %101 = vector.broadcast %cst_46 : f32 to vector<8x128xf32>
    %102 = arith.mulf %101, %100 : vector<8x128xf32>
    %103 = math.tanh %102 : vector<8x128xf32>
    %cst_47 = arith.constant 5.000000e-01 : f32
    %104 = vector.broadcast %cst_47 : f32 to vector<8x128xf32>
    %105 = arith.mulf %104, %103 : vector<8x128xf32>
    %cst_48 = arith.constant 5.000000e-01 : f32
    %106 = vector.broadcast %cst_48 : f32 to vector<8x128xf32>
    %107 = arith.addf %105, %106 : vector<8x128xf32>
    %108 = vector.extract_strided_slice %91 {offsets = [0, 256], sizes = [8, 128], strides = [1, 1]} : vector<8x512xf32> to vector<8x128xf32>
    %109 = math.tanh %108 : vector<8x128xf32>
    %110 = vector.extract_strided_slice %91 {offsets = [0, 384], sizes = [8, 128], strides = [1, 1]} : vector<8x512xf32> to vector<8x128xf32>
    %cst_49 = arith.constant 5.000000e-01 : f32
    %111 = vector.broadcast %cst_49 : f32 to vector<8x128xf32>
    %112 = arith.mulf %111, %110 : vector<8x128xf32>
    %113 = math.tanh %112 : vector<8x128xf32>
    %cst_50 = arith.constant 5.000000e-01 : f32
    %114 = vector.broadcast %cst_50 : f32 to vector<8x128xf32>
    %115 = arith.mulf %114, %113 : vector<8x128xf32>
    %cst_51 = arith.constant 5.000000e-01 : f32
    %116 = vector.broadcast %cst_51 : f32 to vector<8x128xf32>
    %117 = arith.addf %115, %116 : vector<8x128xf32>
    %118 = arith.mulf %107, %82 : vector<8x128xf32>
    %119 = arith.mulf %99, %109 : vector<8x128xf32>
    %120 = arith.addf %118, %119 : vector<8x128xf32>
    %121 = math.tanh %120 : vector<8x128xf32>
    %122 = arith.mulf %117, %121 : vector<8x128xf32>
    %c3_i32 = arith.constant 3 : i32
    %c8_i32_52 = arith.constant 8 : i32
    %123 = arith.muli %c3_i32, %c8_i32_52 : i32
    %124 = tpu.assume_multiple %123, 8 : i32
    %125 = arith.index_cast %124 : i32 to index
    %c0_53 = arith.constant 0 : index
    %126 = vector.load %arg11[%125, %c0_53] : memref<64x512xf32, #tpu.memory_space<vmem>>, vector<8x512xf32>
    %c0_54 = arith.constant 0 : index
    %c0_55 = arith.constant 0 : index
    %127 = vector.load %arg2[%c0_54, %c0_55] : memref<128x512xf32, #tpu.memory_space<vmem>>, vector<128x512xf32>
    %cst_56 = arith.constant dense<0.000000e+00> : vector<8x512xf32>
    %128 = tpu.matmul %122, %127, %cst_56 {dimension_numbers = #tpu.dot_dimension_numbers<[1], [0], [0], [1], [0, 0, 1, 1], [], []>} : vector<8x128xf32>, vector<128x512xf32>, vector<8x512xf32> -> vector<8x512xf32>
    %129 = arith.addf %126, %128 : vector<8x512xf32>
    %130 = vector.extract_strided_slice %129 {offsets = [0, 0], sizes = [8, 128], strides = [1, 1]} : vector<8x512xf32> to vector<8x128xf32>
    %cst_57 = arith.constant 5.000000e-01 : f32
    %131 = vector.broadcast %cst_57 : f32 to vector<8x128xf32>
    %132 = arith.mulf %131, %130 : vector<8x128xf32>
    %133 = math.tanh %132 : vector<8x128xf32>
    %cst_58 = arith.constant 5.000000e-01 : f32
    %134 = vector.broadcast %cst_58 : f32 to vector<8x128xf32>
    %135 = arith.mulf %134, %133 : vector<8x128xf32>
    %cst_59 = arith.constant 5.000000e-01 : f32
    %136 = vector.broadcast %cst_59 : f32 to vector<8x128xf32>
    %137 = arith.addf %135, %136 : vector<8x128xf32>
    %138 = vector.extract_strided_slice %129 {offsets = [0, 128], sizes = [8, 128], strides = [1, 1]} : vector<8x512xf32> to vector<8x128xf32>
    %cst_60 = arith.constant 5.000000e-01 : f32
    %139 = vector.broadcast %cst_60 : f32 to vector<8x128xf32>
    %140 = arith.mulf %139, %138 : vector<8x128xf32>
    %141 = math.tanh %140 : vector<8x128xf32>
    %cst_61 = arith.constant 5.000000e-01 : f32
    %142 = vector.broadcast %cst_61 : f32 to vector<8x128xf32>
    %143 = arith.mulf %142, %141 : vector<8x128xf32>
    %cst_62 = arith.constant 5.000000e-01 : f32
    %144 = vector.broadcast %cst_62 : f32 to vector<8x128xf32>
    %145 = arith.addf %143, %144 : vector<8x128xf32>
    %146 = vector.extract_strided_slice %129 {offsets = [0, 256], sizes = [8, 128], strides = [1, 1]} : vector<8x512xf32> to vector<8x128xf32>
    %147 = math.tanh %146 : vector<8x128xf32>
    %148 = vector.extract_strided_slice %129 {offsets = [0, 384], sizes = [8, 128], strides = [1, 1]} : vector<8x512xf32> to vector<8x128xf32>
    %cst_63 = arith.constant 5.000000e-01 : f32
    %149 = vector.broadcast %cst_63 : f32 to vector<8x128xf32>
    %150 = arith.mulf %149, %148 : vector<8x128xf32>
    %151 = math.tanh %150 : vector<8x128xf32>
    %cst_64 = arith.constant 5.000000e-01 : f32
    %152 = vector.broadcast %cst_64 : f32 to vector<8x128xf32>
    %153 = arith.mulf %152, %151 : vector<8x128xf32>
    %cst_65 = arith.constant 5.000000e-01 : f32
    %154 = vector.broadcast %cst_65 : f32 to vector<8x128xf32>
    %155 = arith.addf %153, %154 : vector<8x128xf32>
    %156 = arith.mulf %145, %120 : vector<8x128xf32>
    %157 = arith.mulf %137, %147 : vector<8x128xf32>
    %158 = arith.addf %156, %157 : vector<8x128xf32>
    %159 = math.tanh %158 : vector<8x128xf32>
    %160 = arith.mulf %155, %159 : vector<8x128xf32>
    %c4_i32 = arith.constant 4 : i32
    %c8_i32_66 = arith.constant 8 : i32
    %161 = arith.muli %c4_i32, %c8_i32_66 : i32
    %162 = tpu.assume_multiple %161, 8 : i32
    %163 = arith.index_cast %162 : i32 to index
    %c0_67 = arith.constant 0 : index
    %164 = vector.load %arg11[%163, %c0_67] : memref<64x512xf32, #tpu.memory_space<vmem>>, vector<8x512xf32>
    %c0_68 = arith.constant 0 : index
    %c0_69 = arith.constant 0 : index
    %165 = vector.load %arg2[%c0_68, %c0_69] : memref<128x512xf32, #tpu.memory_space<vmem>>, vector<128x512xf32>
    %cst_70 = arith.constant dense<0.000000e+00> : vector<8x512xf32>
    %166 = tpu.matmul %160, %165, %cst_70 {dimension_numbers = #tpu.dot_dimension_numbers<[1], [0], [0], [1], [0, 0, 1, 1], [], []>} : vector<8x128xf32>, vector<128x512xf32>, vector<8x512xf32> -> vector<8x512xf32>
    %167 = arith.addf %164, %166 : vector<8x512xf32>
    %168 = vector.extract_strided_slice %167 {offsets = [0, 0], sizes = [8, 128], strides = [1, 1]} : vector<8x512xf32> to vector<8x128xf32>
    %cst_71 = arith.constant 5.000000e-01 : f32
    %169 = vector.broadcast %cst_71 : f32 to vector<8x128xf32>
    %170 = arith.mulf %169, %168 : vector<8x128xf32>
    %171 = math.tanh %170 : vector<8x128xf32>
    %cst_72 = arith.constant 5.000000e-01 : f32
    %172 = vector.broadcast %cst_72 : f32 to vector<8x128xf32>
    %173 = arith.mulf %172, %171 : vector<8x128xf32>
    %cst_73 = arith.constant 5.000000e-01 : f32
    %174 = vector.broadcast %cst_73 : f32 to vector<8x128xf32>
    %175 = arith.addf %173, %174 : vector<8x128xf32>
    %176 = vector.extract_strided_slice %167 {offsets = [0, 128], sizes = [8, 128], strides = [1, 1]} : vector<8x512xf32> to vector<8x128xf32>
    %cst_74 = arith.constant 5.000000e-01 : f32
    %177 = vector.broadcast %cst_74 : f32 to vector<8x128xf32>
    %178 = arith.mulf %177, %176 : vector<8x128xf32>
    %179 = math.tanh %178 : vector<8x128xf32>
    %cst_75 = arith.constant 5.000000e-01 : f32
    %180 = vector.broadcast %cst_75 : f32 to vector<8x128xf32>
    %181 = arith.mulf %180, %179 : vector<8x128xf32>
    %cst_76 = arith.constant 5.000000e-01 : f32
    %182 = vector.broadcast %cst_76 : f32 to vector<8x128xf32>
    %183 = arith.addf %181, %182 : vector<8x128xf32>
    %184 = vector.extract_strided_slice %167 {offsets = [0, 256], sizes = [8, 128], strides = [1, 1]} : vector<8x512xf32> to vector<8x128xf32>
    %185 = math.tanh %184 : vector<8x128xf32>
    %186 = vector.extract_strided_slice %167 {offsets = [0, 384], sizes = [8, 128], strides = [1, 1]} : vector<8x512xf32> to vector<8x128xf32>
    %cst_77 = arith.constant 5.000000e-01 : f32
    %187 = vector.broadcast %cst_77 : f32 to vector<8x128xf32>
    %188 = arith.mulf %187, %186 : vector<8x128xf32>
    %189 = math.tanh %188 : vector<8x128xf32>
    %cst_78 = arith.constant 5.000000e-01 : f32
    %190 = vector.broadcast %cst_78 : f32 to vector<8x128xf32>
    %191 = arith.mulf %190, %189 : vector<8x128xf32>
    %cst_79 = arith.constant 5.000000e-01 : f32
    %192 = vector.broadcast %cst_79 : f32 to vector<8x128xf32>
    %193 = arith.addf %191, %192 : vector<8x128xf32>
    %194 = arith.mulf %183, %158 : vector<8x128xf32>
    %195 = arith.mulf %175, %185 : vector<8x128xf32>
    %196 = arith.addf %194, %195 : vector<8x128xf32>
    %197 = math.tanh %196 : vector<8x128xf32>
    %198 = arith.mulf %193, %197 : vector<8x128xf32>
    %c5_i32 = arith.constant 5 : i32
    %c8_i32_80 = arith.constant 8 : i32
    %199 = arith.muli %c5_i32, %c8_i32_80 : i32
    %200 = tpu.assume_multiple %199, 8 : i32
    %201 = arith.index_cast %200 : i32 to index
    %c0_81 = arith.constant 0 : index
    %202 = vector.load %arg11[%201, %c0_81] : memref<64x512xf32, #tpu.memory_space<vmem>>, vector<8x512xf32>
    %c0_82 = arith.constant 0 : index
    %c0_83 = arith.constant 0 : index
    %203 = vector.load %arg2[%c0_82, %c0_83] : memref<128x512xf32, #tpu.memory_space<vmem>>, vector<128x512xf32>
    %cst_84 = arith.constant dense<0.000000e+00> : vector<8x512xf32>
    %204 = tpu.matmul %198, %203, %cst_84 {dimension_numbers = #tpu.dot_dimension_numbers<[1], [0], [0], [1], [0, 0, 1, 1], [], []>} : vector<8x128xf32>, vector<128x512xf32>, vector<8x512xf32> -> vector<8x512xf32>
    %205 = arith.addf %202, %204 : vector<8x512xf32>
    %206 = vector.extract_strided_slice %205 {offsets = [0, 0], sizes = [8, 128], strides = [1, 1]} : vector<8x512xf32> to vector<8x128xf32>
    %cst_85 = arith.constant 5.000000e-01 : f32
    %207 = vector.broadcast %cst_85 : f32 to vector<8x128xf32>
    %208 = arith.mulf %207, %206 : vector<8x128xf32>
    %209 = math.tanh %208 : vector<8x128xf32>
    %cst_86 = arith.constant 5.000000e-01 : f32
    %210 = vector.broadcast %cst_86 : f32 to vector<8x128xf32>
    %211 = arith.mulf %210, %209 : vector<8x128xf32>
    %cst_87 = arith.constant 5.000000e-01 : f32
    %212 = vector.broadcast %cst_87 : f32 to vector<8x128xf32>
    %213 = arith.addf %211, %212 : vector<8x128xf32>
    %214 = vector.extract_strided_slice %205 {offsets = [0, 128], sizes = [8, 128], strides = [1, 1]} : vector<8x512xf32> to vector<8x128xf32>
    %cst_88 = arith.constant 5.000000e-01 : f32
    %215 = vector.broadcast %cst_88 : f32 to vector<8x128xf32>
    %216 = arith.mulf %215, %214 : vector<8x128xf32>
    %217 = math.tanh %216 : vector<8x128xf32>
    %cst_89 = arith.constant 5.000000e-01 : f32
    %218 = vector.broadcast %cst_89 : f32 to vector<8x128xf32>
    %219 = arith.mulf %218, %217 : vector<8x128xf32>
    %cst_90 = arith.constant 5.000000e-01 : f32
    %220 = vector.broadcast %cst_90 : f32 to vector<8x128xf32>
    %221 = arith.addf %219, %220 : vector<8x128xf32>
    %222 = vector.extract_strided_slice %205 {offsets = [0, 256], sizes = [8, 128], strides = [1, 1]} : vector<8x512xf32> to vector<8x128xf32>
    %223 = math.tanh %222 : vector<8x128xf32>
    %224 = vector.extract_strided_slice %205 {offsets = [0, 384], sizes = [8, 128], strides = [1, 1]} : vector<8x512xf32> to vector<8x128xf32>
    %cst_91 = arith.constant 5.000000e-01 : f32
    %225 = vector.broadcast %cst_91 : f32 to vector<8x128xf32>
    %226 = arith.mulf %225, %224 : vector<8x128xf32>
    %227 = math.tanh %226 : vector<8x128xf32>
    %cst_92 = arith.constant 5.000000e-01 : f32
    %228 = vector.broadcast %cst_92 : f32 to vector<8x128xf32>
    %229 = arith.mulf %228, %227 : vector<8x128xf32>
    %cst_93 = arith.constant 5.000000e-01 : f32
    %230 = vector.broadcast %cst_93 : f32 to vector<8x128xf32>
    %231 = arith.addf %229, %230 : vector<8x128xf32>
    %232 = arith.mulf %221, %196 : vector<8x128xf32>
    %233 = arith.mulf %213, %223 : vector<8x128xf32>
    %234 = arith.addf %232, %233 : vector<8x128xf32>
    %235 = math.tanh %234 : vector<8x128xf32>
    %236 = arith.mulf %231, %235 : vector<8x128xf32>
    %c6_i32 = arith.constant 6 : i32
    %c8_i32_94 = arith.constant 8 : i32
    %237 = arith.muli %c6_i32, %c8_i32_94 : i32
    %238 = tpu.assume_multiple %237, 8 : i32
    %239 = arith.index_cast %238 : i32 to index
    %c0_95 = arith.constant 0 : index
    %240 = vector.load %arg11[%239, %c0_95] : memref<64x512xf32, #tpu.memory_space<vmem>>, vector<8x512xf32>
    %c0_96 = arith.constant 0 : index
    %c0_97 = arith.constant 0 : index
    %241 = vector.load %arg2[%c0_96, %c0_97] : memref<128x512xf32, #tpu.memory_space<vmem>>, vector<128x512xf32>
    %cst_98 = arith.constant dense<0.000000e+00> : vector<8x512xf32>
    %242 = tpu.matmul %236, %241, %cst_98 {dimension_numbers = #tpu.dot_dimension_numbers<[1], [0], [0], [1], [0, 0, 1, 1], [], []>} : vector<8x128xf32>, vector<128x512xf32>, vector<8x512xf32> -> vector<8x512xf32>
    %243 = arith.addf %240, %242 : vector<8x512xf32>
    %244 = vector.extract_strided_slice %243 {offsets = [0, 0], sizes = [8, 128], strides = [1, 1]} : vector<8x512xf32> to vector<8x128xf32>
    %cst_99 = arith.constant 5.000000e-01 : f32
    %245 = vector.broadcast %cst_99 : f32 to vector<8x128xf32>
    %246 = arith.mulf %245, %244 : vector<8x128xf32>
    %247 = math.tanh %246 : vector<8x128xf32>
    %cst_100 = arith.constant 5.000000e-01 : f32
    %248 = vector.broadcast %cst_100 : f32 to vector<8x128xf32>
    %249 = arith.mulf %248, %247 : vector<8x128xf32>
    %cst_101 = arith.constant 5.000000e-01 : f32
    %250 = vector.broadcast %cst_101 : f32 to vector<8x128xf32>
    %251 = arith.addf %249, %250 : vector<8x128xf32>
    %252 = vector.extract_strided_slice %243 {offsets = [0, 128], sizes = [8, 128], strides = [1, 1]} : vector<8x512xf32> to vector<8x128xf32>
    %cst_102 = arith.constant 5.000000e-01 : f32
    %253 = vector.broadcast %cst_102 : f32 to vector<8x128xf32>
    %254 = arith.mulf %253, %252 : vector<8x128xf32>
    %255 = math.tanh %254 : vector<8x128xf32>
    %cst_103 = arith.constant 5.000000e-01 : f32
    %256 = vector.broadcast %cst_103 : f32 to vector<8x128xf32>
    %257 = arith.mulf %256, %255 : vector<8x128xf32>
    %cst_104 = arith.constant 5.000000e-01 : f32
    %258 = vector.broadcast %cst_104 : f32 to vector<8x128xf32>
    %259 = arith.addf %257, %258 : vector<8x128xf32>
    %260 = vector.extract_strided_slice %243 {offsets = [0, 256], sizes = [8, 128], strides = [1, 1]} : vector<8x512xf32> to vector<8x128xf32>
    %261 = math.tanh %260 : vector<8x128xf32>
    %262 = vector.extract_strided_slice %243 {offsets = [0, 384], sizes = [8, 128], strides = [1, 1]} : vector<8x512xf32> to vector<8x128xf32>
    %cst_105 = arith.constant 5.000000e-01 : f32
    %263 = vector.broadcast %cst_105 : f32 to vector<8x128xf32>
    %264 = arith.mulf %263, %262 : vector<8x128xf32>
    %265 = math.tanh %264 : vector<8x128xf32>
    %cst_106 = arith.constant 5.000000e-01 : f32
    %266 = vector.broadcast %cst_106 : f32 to vector<8x128xf32>
    %267 = arith.mulf %266, %265 : vector<8x128xf32>
    %cst_107 = arith.constant 5.000000e-01 : f32
    %268 = vector.broadcast %cst_107 : f32 to vector<8x128xf32>
    %269 = arith.addf %267, %268 : vector<8x128xf32>
    %270 = arith.mulf %259, %234 : vector<8x128xf32>
    %271 = arith.mulf %251, %261 : vector<8x128xf32>
    %272 = arith.addf %270, %271 : vector<8x128xf32>
    %273 = math.tanh %272 : vector<8x128xf32>
    %274 = arith.mulf %269, %273 : vector<8x128xf32>
    %c7_i32 = arith.constant 7 : i32
    %c8_i32_108 = arith.constant 8 : i32
    %275 = arith.muli %c7_i32, %c8_i32_108 : i32
    %276 = tpu.assume_multiple %275, 8 : i32
    %277 = arith.index_cast %276 : i32 to index
    %c0_109 = arith.constant 0 : index
    %278 = vector.load %arg11[%277, %c0_109] : memref<64x512xf32, #tpu.memory_space<vmem>>, vector<8x512xf32>
    %c0_110 = arith.constant 0 : index
    %c0_111 = arith.constant 0 : index
    %279 = vector.load %arg2[%c0_110, %c0_111] : memref<128x512xf32, #tpu.memory_space<vmem>>, vector<128x512xf32>
    %cst_112 = arith.constant dense<0.000000e+00> : vector<8x512xf32>
    %280 = tpu.matmul %274, %279, %cst_112 {dimension_numbers = #tpu.dot_dimension_numbers<[1], [0], [0], [1], [0, 0, 1, 1], [], []>} : vector<8x128xf32>, vector<128x512xf32>, vector<8x512xf32> -> vector<8x512xf32>
    %281 = arith.addf %278, %280 : vector<8x512xf32>
    %282 = vector.extract_strided_slice %281 {offsets = [0, 0], sizes = [8, 128], strides = [1, 1]} : vector<8x512xf32> to vector<8x128xf32>
    %cst_113 = arith.constant 5.000000e-01 : f32
    %283 = vector.broadcast %cst_113 : f32 to vector<8x128xf32>
    %284 = arith.mulf %283, %282 : vector<8x128xf32>
    %285 = math.tanh %284 : vector<8x128xf32>
    %cst_114 = arith.constant 5.000000e-01 : f32
    %286 = vector.broadcast %cst_114 : f32 to vector<8x128xf32>
    %287 = arith.mulf %286, %285 : vector<8x128xf32>
    %cst_115 = arith.constant 5.000000e-01 : f32
    %288 = vector.broadcast %cst_115 : f32 to vector<8x128xf32>
    %289 = arith.addf %287, %288 : vector<8x128xf32>
    %290 = vector.extract_strided_slice %281 {offsets = [0, 128], sizes = [8, 128], strides = [1, 1]} : vector<8x512xf32> to vector<8x128xf32>
    %cst_116 = arith.constant 5.000000e-01 : f32
    %291 = vector.broadcast %cst_116 : f32 to vector<8x128xf32>
    %292 = arith.mulf %291, %290 : vector<8x128xf32>
    %293 = math.tanh %292 : vector<8x128xf32>
    %cst_117 = arith.constant 5.000000e-01 : f32
    %294 = vector.broadcast %cst_117 : f32 to vector<8x128xf32>
    %295 = arith.mulf %294, %293 : vector<8x128xf32>
    %cst_118 = arith.constant 5.000000e-01 : f32
    %296 = vector.broadcast %cst_118 : f32 to vector<8x128xf32>
    %297 = arith.addf %295, %296 : vector<8x128xf32>
    %298 = vector.extract_strided_slice %281 {offsets = [0, 256], sizes = [8, 128], strides = [1, 1]} : vector<8x512xf32> to vector<8x128xf32>
    %299 = math.tanh %298 : vector<8x128xf32>
    %300 = vector.extract_strided_slice %281 {offsets = [0, 384], sizes = [8, 128], strides = [1, 1]} : vector<8x512xf32> to vector<8x128xf32>
    %cst_119 = arith.constant 5.000000e-01 : f32
    %301 = vector.broadcast %cst_119 : f32 to vector<8x128xf32>
    %302 = arith.mulf %301, %300 : vector<8x128xf32>
    %303 = math.tanh %302 : vector<8x128xf32>
    %cst_120 = arith.constant 5.000000e-01 : f32
    %304 = vector.broadcast %cst_120 : f32 to vector<8x128xf32>
    %305 = arith.mulf %304, %303 : vector<8x128xf32>
    %cst_121 = arith.constant 5.000000e-01 : f32
    %306 = vector.broadcast %cst_121 : f32 to vector<8x128xf32>
    %307 = arith.addf %305, %306 : vector<8x128xf32>
    %308 = arith.mulf %297, %272 : vector<8x128xf32>
    %309 = arith.mulf %289, %299 : vector<8x128xf32>
    %310 = arith.addf %308, %309 : vector<8x128xf32>
    %311 = math.tanh %310 : vector<8x128xf32>
    %312 = arith.mulf %307, %311 : vector<8x128xf32>
    %c8_i32_122 = arith.constant 8 : i32
    %c0_123 = arith.constant 0 : index
    %c0_124 = arith.constant 0 : index
    %313 = vector.load %arg9[%c0_123, %c0_124] : memref<8x128xf32, #tpu.memory_space<vmem>>, vector<8x128xf32>
    tpu.vector_store %arg9[%c0_123, %c0_124], %312 {strides = array<i32>} : memref<8x128xf32, #tpu.memory_space<vmem>>, vector<8x128xf32>,
    %c0_125 = arith.constant 0 : index
    %c0_126 = arith.constant 0 : index
    %314 = vector.load %arg10[%c0_125, %c0_126] : memref<8x128xf32, #tpu.memory_space<vmem>>, vector<8x128xf32>
    tpu.vector_store %arg10[%c0_125, %c0_126], %310 {strides = array<i32>} : memref<8x128xf32, #tpu.memory_space<vmem>>, vector<8x128xf32>,
    %c0_127 = arith.constant 0 : index
    %c0_128 = arith.constant 0 : index
    %315 = vector.load %arg4[%c0_127, %c0_128] : memref<128x128xf32, #tpu.memory_space<vmem>>, vector<128x128xf32>
    %cst_129 = arith.constant dense<0.000000e+00> : vector<8x128xf32>
    %316 = tpu.matmul %312, %315, %cst_129 {dimension_numbers = #tpu.dot_dimension_numbers<[1], [0], [0], [1], [0, 0, 1, 1], [], []>} : vector<8x128xf32>, vector<128x128xf32>, vector<8x128xf32> -> vector<8x128xf32>
    %c0_130 = arith.constant 0 : index
    %c0_131 = arith.constant 0 : index
    %317 = vector.load %arg5[%c0_130, %c0_131] : memref<1x128xf32, #tpu.memory_space<vmem>>, vector<1x128xf32>
    %318 = vector.broadcast %317 : vector<1x128xf32> to vector<8x128xf32>
    %319 = arith.addf %316, %318 : vector<8x128xf32>
    %c0_132 = arith.constant 0 : index
    %c0_133 = arith.constant 0 : index
    %320 = vector.load %arg8[%c0_132, %c0_133] : memref<8x128xf32, #tpu.memory_space<vmem>>, vector<8x128xf32>
    tpu.vector_store %arg8[%c0_132, %c0_133], %319 {strides = array<i32>} : memref<8x128xf32, #tpu.memory_space<vmem>>, vector<8x128xf32>,
    return
  }
}

</mosaic_0001>

<llo_original>
// kernel: tpu_custom_call.1
$region0: #{tpu_custom_call.1}
  #allocation0 [shape = 'u32[]', space=smem, size = 0x4, offset = 0x4, fixed_abs, tag = 'smem constant byte address 0x4 - core index']
  #allocation1 [shape = 'u32[144,128]{1,0:T(1,128)}', space=vmem, size = 0x12000, scoped, tag = 'internal scratch']
  #allocation2 [shape = 'f32[64,512]{1,0:T(8,128)}', space=vmem, size = 0x20000, scoped, tag = 'scratch operand']
  %s0 = inlined_call_operand.hbm [shape: f32[64,128], index: 0, kind: input, shape index: {}]
  %s1 = inlined_call_operand.hbm [shape: f32[128,512], index: 1, kind: input, shape index: {}]
  %s2 = inlined_call_operand.hbm [shape: f32[128,512], index: 2, kind: input, shape index: {}]
  %s3 = inlined_call_operand.hbm [shape: f32[1,512], index: 3, kind: input, shape index: {}]
  %s4 = inlined_call_operand.hbm [shape: f32[128,128], index: 4, kind: input, shape index: {}]
  %s5 = inlined_call_operand.vmem [shape: f32[1,128], index: 5, kind: input, shape index: {}]
  %s6 = inlined_call_operand.vmem [shape: f32[8,128], index: 6, kind: input, shape index: {}]
  %s7 = inlined_call_operand.vmem [shape: f32[8,128], index: 7, kind: input, shape index: {}]
  %s8 = inlined_call_operand.hbm [shape: f32[8,128], index: 8, kind: output, shape index: {0}]
  %s9 = inlined_call_operand.hbm [shape: f32[8,128], index: 9, kind: output, shape index: {1}]
  %s10 = inlined_call_operand.hbm [shape: f32[8,128], index: 10, kind: output, shape index: {2}]
  %11 = xla_tuple %s8, %s9, %s10
  %s12 = sld [smem:[#allocation0]]
  $region78: #{tpu_custom_call.1} parent=0
    _
  %s14 = ssub.s32 1, %s12
  %s15 = scalar_select 0, %s14, %s12
  $region1: #{tpu_custom_call.1} parent=0
    #allocation3 [shape = 'u8[32768]{0}', space=vmem, size = 0x8000, scoped, tag = 'input window, operand 0, single buffered']
    #allocation4 [shape = 's32[1]{0}', space=sflag, size = 0x4, scoped, tag = 'scoped memory for tpu_custom_call.1']
    #allocation5 [shape = 's32[1]{0}', space=sflag, size = 0x4, scoped, tag = 'scoped memory for tpu_custom_call.1']
    #allocation6 [shape = 'u8[262144]{0}', space=vmem, size = 0x40000, scoped, tag = 'input window, operand 1, single buffered']
    #allocation7 [shape = 's32[1]{0}', space=sflag, size = 0x4, scoped, tag = 'scoped memory for tpu_custom_call.1']
    #allocation8 [shape = 'u8[262144]{0}', space=vmem, size = 0x40000, scoped, tag = 'input window, operand 2, single buffered']
    #allocation9 [shape = 'u8[2048]{0}', space=vmem, size = 0x800, scoped, tag = 'input window, operand 3, single buffered']
    #allocation10 [shape = 's32[1]{0}', space=sflag, size = 0x4, scoped, tag = 'scoped memory for tpu_custom_call.1']
    #allocation11 [shape = 'u8[65536]{0}', space=vmem, size = 0x10000, scoped, tag = 'input window, operand 4, single buffered']
    #allocation12 [shape = 'u8[4096]{0}', space=vmem, size = 0x1000, scoped, tag = 'output window, operand 0, single buffered']
    #allocation13 [shape = 'u8[4096]{0}', space=vmem, size = 0x1000, scoped, tag = 'output window, operand 1, single buffered']
    #allocation14 [shape = 's32[1]{0}', space=sflag, size = 0x4, scoped, tag = 'scoped memory for tpu_custom_call.1']
    #allocation15 [shape = 'u8[4096]{0}', space=vmem, size = 0x1000, scoped, tag = 'output window, operand 2, single buffered']
    %16 = vsyncpa [#allocation4], 0
    %17 = vsyncpa [#allocation7], 0
    %18 = vsyncpa [#allocation10], 0
    %19 = vsyncpa [#allocation5], 0
    %20 = vsyncpa [#allocation14], 0
    // Predicated region
    $region2: #{tpu_custom_call.1} parent=1 // pred_check
      _
    $region3: #{tpu_custom_call.1} parent=1 // pred_check_branch
      %22 = sbr.rel (0) target = $region5
    $region4: #{tpu_custom_call.1} parent=1 // pred_region
      %s24 = ssub.s32 1024, 1024
      %25 = vsyncadd [#allocation4], %s24
      %s26 = sshll.u32 [#allocation3], 4
      %s27 = int_to_ptr.vmem [resolvable:$true] %s26
      %32 = dma.hbm_to_vmem [thread:$0]  %s0, 1024, %s27, [#allocation4], 128, 128, 8
    $region5: #{tpu_custom_call.1} parent=1 // pred_fallthru
      _
    // Predicated region
    $region6: #{tpu_custom_call.1} parent=1 // pred_check
      _
    $region7: #{tpu_custom_call.1} parent=1 // pred_check_branch
      %34 = sbr.rel (0) target = $region9
    $region8: #{tpu_custom_call.1} parent=1 // pred_region
      %s36 = ssub.s32 8192, 8192
      %37 = vsyncadd [#allocation7], %s36
      %s38 = sshll.u32 [#allocation6], 4
      %s39 = int_to_ptr.vmem [resolvable:$true] %s38
      %44 = dma.hbm_to_vmem [thread:$0]  %s1, 8192, %s39, [#allocation7], 512, 512, 32
    $region9: #{tpu_custom_call.1} parent=1 // pred_fallthru
      _
    // Predicated region
    $region10: #{tpu_custom_call.1} parent=1 // pred_check
      _
    $region11: #{tpu_custom_call.1} parent=1 // pred_check_branch
      %46 = sbr.rel (0) target = $region13
    $region12: #{tpu_custom_call.1} parent=1 // pred_region
      %s48 = ssub.s32 8192, 8192
      %49 = vsyncadd [#allocation7], %s48
      %s50 = sshll.u32 [#allocation8], 4
      %s51 = int_to_ptr.vmem [resolvable:$true] %s50
      %56 = dma.hbm_to_vmem [thread:$0]  %s2, 8192, %s51, [#allocation7], 512, 512, 32
    $region13: #{tpu_custom_call.1} parent=1 // pred_fallthru
      _
    // Predicated region
    $region14: #{tpu_custom_call.1} parent=1 // pred_check
      _
    $region15: #{tpu_custom_call.1} parent=1 // pred_check_branch
      %58 = sbr.rel (0) target = $region17
    $region16: #{tpu_custom_call.1} parent=1 // pred_region
      %s60 = ssub.s32 64, 64
      %61 = vsyncadd [#allocation10], %s60
      %s63 = sshll.u32 [#allocation9], 4
      %s64 = int_to_ptr.vmem [resolvable:$true] %s63
      %66 = dma.hbm_to_vmem [thread:$0]  %s3, 64, %s64, [#allocation10]
    $region17: #{tpu_custom_call.1} parent=1 // pred_fallthru
      _
    // Predicated region
    $region18: #{tpu_custom_call.1} parent=1 // pred_check
      _
    $region19: #{tpu_custom_call.1} parent=1 // pred_check_branch
      %68 = sbr.rel (0) target = $region21
    $region20: #{tpu_custom_call.1} parent=1 // pred_region
      %s70 = ssub.s32 2048, 2048
      %71 = vsyncadd [#allocation10], %s70
      %s72 = sshll.u32 [#allocation11], 4
      %s73 = int_to_ptr.vmem [resolvable:$true] %s72
      %78 = dma.hbm_to_vmem [thread:$0]  %s4, 2048, %s73, [#allocation10], 128, 128, 8
    $region21: #{tpu_custom_call.1} parent=1 // pred_fallthru
      _
    // Predicated region
    $region22: #{tpu_custom_call.1} parent=1 // pred_check
      _
    $region23: #{tpu_custom_call.1} parent=1 // pred_check_branch
      %80 = sbr.rel (0) target = $region25
    $region24: #{tpu_custom_call.1} parent=1 // pred_region
      _
    $region25: #{tpu_custom_call.1} parent=1 // pred_fallthru
      _
    // Predicated region
    $region26: #{tpu_custom_call.1} parent=1 // pred_check
      _
    $region27: #{tpu_custom_call.1} parent=1 // pred_check_branch
      %82 = sbr.rel (0) target = $region29
    $region28: #{tpu_custom_call.1} parent=1 // pred_region
      _
    $region29: #{tpu_custom_call.1} parent=1 // pred_fallthru
      _
    // Predicated region
    $region30: #{tpu_custom_call.1} parent=1 // pred_check
      _
    $region31: #{tpu_custom_call.1} parent=1 // pred_check_branch
      %84 = sbr.rel (0) target = $region33
    $region32: #{tpu_custom_call.1} parent=1 // pred_region
      _
    $region33: #{tpu_custom_call.1} parent=1 // pred_fallthru
      _
    // Predicated region
    $region34: #{tpu_custom_call.1} parent=1 // pred_check
      _
    $region35: #{tpu_custom_call.1} parent=1 // pred_check_branch
      %86 = sbr.rel (0) target = $region37
    $region36: #{tpu_custom_call.1} parent=1 // pred_region
      %87 = dma.done [#allocation4], 1024
    $region37: #{tpu_custom_call.1} parent=1 // pred_fallthru
      _
    // Predicated region
    $region38: #{tpu_custom_call.1} parent=1 // pred_check
      _
    $region39: #{tpu_custom_call.1} parent=1 // pred_check_branch
      %89 = sbr.rel (0) target = $region41
    $region40: #{tpu_custom_call.1} parent=1 // pred_region
      %90 = dma.done [#allocation7], 8192
    $region41: #{tpu_custom_call.1} parent=1 // pred_fallthru
      _
    // Predicated region
    $region42: #{tpu_custom_call.1} parent=1 // pred_check
      _
    $region43: #{tpu_custom_call.1} parent=1 // pred_check_branch
      %92 = sbr.rel (0) target = $region45
    $region44: #{tpu_custom_call.1} parent=1 // pred_region
      %93 = dma.done [#allocation7], 8192
    $region45: #{tpu_custom_call.1} parent=1 // pred_fallthru
      _
    // Predicated region
    $region46: #{tpu_custom_call.1} parent=1 // pred_check
      _
    $region47: #{tpu_custom_call.1} parent=1 // pred_check_branch
      %95 = sbr.rel (0) target = $region49
    $region48: #{tpu_custom_call.1} parent=1 // pred_region
      %96 = dma.done [#allocation10], 64
    $region49: #{tpu_custom_call.1} parent=1 // pred_fallthru
      _
    // Predicated region
    $region50: #{tpu_custom_call.1} parent=1 // pred_check
      _
    $region51: #{tpu_custom_call.1} parent=1 // pred_check_branch
      %98 = sbr.rel (0) target = $region53
    $region52: #{tpu_custom_call.1} parent=1 // pred_region
      %99 = dma.done [#allocation10], 2048
    $region53: #{tpu_custom_call.1} parent=1 // pred_fallthru
      _
    %v100 = vld [vmem:[#allocation3] sm:$0xff]
    %v101 = vld [vmem:[#allocation3 + $0x8] sm:$0xff]
    %v102 = vld [vmem:[#allocation3 + $0x10] sm:$0xff]
    %v103 = vld [vmem:[#allocation3 + $0x18] sm:$0xff]
    %v104 = vld [vmem:[#allocation3 + $0x20] sm:$0xff]
    %v105 = vld [vmem:[#allocation3 + $0x28] sm:$0xff]
    %v106 = vld [vmem:[#allocation3 + $0x30] sm:$0xff]
    %v107 = vld [vmem:[#allocation3 + $0x38] sm:$0xff]
    %v108 = vld [vmem:[#allocation6] sm:$0xff]
    %v109 = vld [vmem:[#allocation6 + $0x8] sm:$0xff]
    %v110 = vld [vmem:[#allocation6 + $0x10] sm:$0xff]
    %v111 = vld [vmem:[#allocation6 + $0x18] sm:$0xff]
    %v112 = vld [vmem:[#allocation6 + $0x20] sm:$0xff]
    %v113 = vld [vmem:[#allocation6 + $0x28] sm:$0xff]
    %v114 = vld [vmem:[#allocation6 + $0x30] sm:$0xff]
    %v115 = vld [vmem:[#allocation6 + $0x38] sm:$0xff]
    %v116 = vld [vmem:[#allocation6 + $0x40] sm:$0xff]
    %v117 = vld [vmem:[#allocation6 + $0x48] sm:$0xff]
    %v118 = vld [vmem:[#allocation6 + $0x50] sm:$0xff]
    %v119 = vld [vmem:[#allocation6 + $0x58] sm:$0xff]
    %v120 = vld [vmem:[#allocation6 + $0x60] sm:$0xff]
    %v121 = vld [vmem:[#allocation6 + $0x68] sm:$0xff]
    %v122 = vld [vmem:[#allocation6 + $0x70] sm:$0xff]
    %v123 = vld [vmem:[#allocation6 + $0x78] sm:$0xff]
    %v124 = vld [vmem:[#allocation6 + $0x80] sm:$0xff]
    %v125 = vld [vmem:[#allocation6 + $0x88] sm:$0xff]
    %v126 = vld [vmem:[#allocation6 + $0x90] sm:$0xff]
    %v127 = vld [vmem:[#allocation6 + $0x98] sm:$0xff]
    %v128 = vld [vmem:[#allocation6 + $0xa0] sm:$0xff]
    %v129 = vld [vmem:[#allocation6 + $0xa8] sm:$0xff]
    %v130 = vld [vmem:[#allocation6 + $0xb0] sm:$0xff]
    %v131 = vld [vmem:[#allocation6 + $0xb8] sm:$0xff]
    %v132 = vld [vmem:[#allocation6 + $0xc0] sm:$0xff]
    %v133 = vld [vmem:[#allocation6 + $0xc8] sm:$0xff]
    %v134 = vld [vmem:[#allocation6 + $0xd0] sm:$0xff]
    %v135 = vld [vmem:[#allocation6 + $0xd8] sm:$0xff]
    %v136 = vld [vmem:[#allocation6 + $0xe0] sm:$0xff]
    %v137 = vld [vmem:[#allocation6 + $0xe8] sm:$0xff]
    %v138 = vld [vmem:[#allocation6 + $0xf0] sm:$0xff]
    %v139 = vld [vmem:[#allocation6 + $0xf8] sm:$0xff]
    %v140 = vld [vmem:[#allocation6 + $0x100] sm:$0xff]
    %v141 = vld [vmem:[#allocation6 + $0x108] sm:$0xff]
    %v142 = vld [vmem:[#allocation6 + $0x110] sm:$0xff]
    %v143 = vld [vmem:[#allocation6 + $0x118] sm:$0xff]
    %v144 = vld [vmem:[#allocation6 + $0x120] sm:$0xff]
    %v145 = vld [vmem:[#allocation6 + $0x128] sm:$0xff]
    %v146 = vld [vmem:[#allocation6 + $0x130] sm:$0xff]
    %v147 = vld [vmem:[#allocation6 + $0x138] sm:$0xff]
    %v148 = vld [vmem:[#allocation6 + $0x140] sm:$0xff]
    %v149 = vld [vmem:[#allocation6 + $0x148] sm:$0xff]
    %v150 = vld [vmem:[#allocation6 + $0x150] sm:$0xff]
    %v151 = vld [vmem:[#allocation6 + $0x158] sm:$0xff]
    %v152 = vld [vmem:[#allocation6 + $0x160] sm:$0xff]
    %v153 = vld [vmem:[#allocation6 + $0x168] sm:$0xff]
    %v154 = vld [vmem:[#allocation6 + $0x170] sm:$0xff]
    %v155 = vld [vmem:[#allocation6 + $0x178] sm:$0xff]
    %v156 = vld [vmem:[#allocation6 + $0x180] sm:$0xff]
    %v157 = vld [vmem:[#allocation6 + $0x188] sm:$0xff]
    %v158 = vld [vmem:[#allocation6 + $0x190] sm:$0xff]
    %v159 = vld [vmem:[#allocation6 + $0x198] sm:$0xff]
    %v160 = vld [vmem:[#allocation6 + $0x1a0] sm:$0xff]
    %v161 = vld [vmem:[#allocation6 + $0x1a8] sm:$0xff]
    %v162 = vld [vmem:[#allocation6 + $0x1b0] sm:$0xff]
    %v163 = vld [vmem:[#allocation6 + $0x1b8] sm:$0xff]
    %v164 = vld [vmem:[#allocation6 + $0x1c0] sm:$0xff]
    %v165 = vld [vmem:[#allocation6 + $0x1c8] sm:$0xff]
    %v166 = vld [vmem:[#allocation6 + $0x1d0] sm:$0xff]
    %v167 = vld [vmem:[#allocation6 + $0x1d8] sm:$0xff]
    %v168 = vld [vmem:[#allocation6 + $0x1e0] sm:$0xff]
    %v169 = vld [vmem:[#allocation6 + $0x1e8] sm:$0xff]
    %v170 = vld [vmem:[#allocation6 + $0x1f0] sm:$0xff]
    %v171 = vld [vmem:[#allocation6 + $0x1f8] sm:$0xff]
    %v172 = vld [vmem:[#allocation9] sm:$0xf]
    %v174 = vlaneseq
    %v175 = vshrl.u32 %v174, 7
    %v176 = vsub.s32 0, %v175
    %v177 = vrot.slane %v172, %v176
    %v178 = vlaneseq
    %v179 = vshrl.u32 %v178, 7
    %v180 = vsub.s32 1, %v179
    %v181 = vrot.slane %v172, %v180
    %v182 = vlaneseq
    %v183 = vshrl.u32 %v182, 7
    %v184 = vsub.s32 2, %v183
    %v185 = vrot.slane %v172, %v184
    %v186 = vlaneseq
    %v187 = vshrl.u32 %v186, 7
    %v188 = vsub.s32 3, %v187
    %v189 = vrot.slane %v172, %v188
    %194 = vmatprep.subr.mxu0 %v109
    %195 = vmatpush1.msra.mxu0 %v108
    %196 = vmatprep.subr.mxu0 %v113
    %197 = vmatpush1.msra.mxu0 %v112
    %198 = vmatprep.subr.mxu0 %v117
    %199 = vmatpush1.msra.mxu0 %v116
    %200 = vmatprep.subr.mxu0 %v121
    %201 = vmatpush1.msra.mxu0 %v120
    %202 = vmatprep.subr.mxu0 %v125
    %203 = vmatpush1.msra.mxu0 %v124
    %204 = vmatprep.subr.mxu0 %v129
    %205 = vmatpush1.msra.mxu0 %v128
    %206 = vmatprep.subr.mxu0 %v133
    %207 = vmatpush1.msra.mxu0 %v132
    %208 = vmatprep.subr.mxu0 %v137
    %209 = vmatpush1.msra.mxu0 %v136
    %210 = vmatprep.subr.mxu0 %v141
    %211 = vmatpush1.msra.mxu0 %v140
    %212 = vmatprep.subr.mxu0 %v145
    %213 = vmatpush1.msra.mxu0 %v144
    %214 = vmatprep.subr.mxu0 %v149
    %215 = vmatpush1.msra.mxu0 %v148
    %216 = vmatprep.subr.mxu0 %v153
    %217 = vmatpush1.msra.mxu0 %v152
    %218 = vmatprep.subr.mxu0 %v157
    %219 = vmatpush1.msra.mxu0 %v156
    %220 = vmatprep.subr.mxu0 %v161
    %221 = vmatpush1.msra.mxu0 %v160
    %222 = vmatprep.subr.mxu0 %v165
    %223 = vmatpush1.msra.mxu0 %v164
    %224 = vmatprep.subr.mxu0 %v169
    %225 = vmatpush1.msra.mxu0 %v168
    %226 = vmatprep.subr.mxu0 0.0
    %227 = vmatpush1.msra.mxu0 0.0
    %228 = vmatprep.subr.mxu0 0.0
    %229 = vmatpush1.msra.mxu0 0.0
    %230 = vmatprep.subr.mxu0 0.0
    %231 = vmatpush1.msra.mxu0 0.0
    %232 = vmatprep.subr.mxu0 0.0
    %233 = vmatpush1.msra.mxu0 0.0
    %234 = vmatprep.subr.mxu0 0.0
    %235 = vmatpush1.msra.mxu0 0.0
    %236 = vmatprep.subr.mxu0 0.0
    %237 = vmatpush1.msra.mxu0 0.0
    %238 = vmatprep.subr.mxu0 0.0
    %239 = vmatpush1.msra.mxu0 0.0
    %240 = vmatprep.subr.mxu0 0.0
    %241 = vmatpush1.msra.mxu0 0.0
    %242 = vmatprep.subr.mxu0 0.0
    %243 = vmatpush1.msra.mxu0 0.0
    %244 = vmatprep.subr.mxu0 0.0
    %245 = vmatpush1.msra.mxu0 0.0
    %246 = vmatprep.subr.mxu0 0.0
    %247 = vmatpush1.msra.mxu0 0.0
    %248 = vmatprep.subr.mxu0 0.0
    %249 = vmatpush1.msra.mxu0 0.0
    %250 = vmatprep.subr.mxu0 0.0
    %251 = vmatpush1.msra.mxu0 0.0
    %252 = vmatprep.subr.mxu0 0.0
    %253 = vmatpush1.msra.mxu0 0.0
    %254 = vmatprep.subr.mxu0 0.0
    %255 = vmatpush1.msra.mxu0 0.0
    %256 = vmatprep.subr.mxu0 0.0
    %257 = vmatpush1.msra.mxu0 0.0
    %258 = vmatprep.mubr.f32.mxu0 0.0
    %259 = vmatmul.mubr.f32.gmra.mrb[0].mxu0 %v100
    %v260 = vpop.f32.mrb[0].mxu0
    %v261 = vadd.f32 %v177, %v260
    %v262 = vpop.f32.mrb[0].mxu0
    %v263 = vadd.f32 %v181, %v262
    %264 = vmatprep.mubr.f32.mxu0 0.0
    %265 = vmatmul.mubr.f32.gmra.mrb[0].mxu0 %v101
    %v266 = vpop.f32.mrb[0].mxu0
    %v267 = vadd.f32 %v177, %v266
    %v268 = vpop.f32.mrb[0].mxu0
    %v269 = vadd.f32 %v181, %v268
    %270 = vmatprep.mubr.f32.mxu0 0.0
    %271 = vmatmul.mubr.f32.gmra.mrb[0].mxu0 %v102
    %v272 = vpop.f32.mrb[0].mxu0
    %v273 = vadd.f32 %v177, %v272
    %v274 = vpop.f32.mrb[0].mxu0
    %v275 = vadd.f32 %v181, %v274
    %276 = vmatprep.mubr.f32.mxu0 0.0
    %277 = vmatmul.mubr.f32.gmra.mrb[0].mxu0 %v103
    %v278 = vpop.f32.mrb[0].mxu0
    %v279 = vadd.f32 %v177, %v278
    %v280 = vpop.f32.mrb[0].mxu0
    %v281 = vadd.f32 %v181, %v280
    %282 = vmatprep.mubr.f32.mxu0 0.0
    %283 = vmatmul.mubr.f32.gmra.mrb[0].mxu0 %v104
    %v284 = vpop.f32.mrb[0].mxu0
    %v285 = vadd.f32 %v177, %v284
    %v286 = vpop.f32.mrb[0].mxu0
    %v287 = vadd.f32 %v181, %v286
    %288 = vmatprep.mubr.f32.mxu0 0.0
    %289 = vmatmul.mubr.f32.gmra.mrb[0].mxu0 %v105
    %v290 = vpop.f32.mrb[0].mxu0
    %v291 = vadd.f32 %v177, %v290
    %v292 = vpop.f32.mrb[0].mxu0
    %v293 = vadd.f32 %v181, %v292
    %294 = vmatprep.mubr.f32.mxu0 0.0
    %295 = vmatmul.mubr.f32.gmra.mrb[0].mxu0 %v106
    %v296 = vpop.f32.mrb[0].mxu0
    %v297 = vadd.f32 %v177, %v296
    %v298 = vpop.f32.mrb[0].mxu0
    %v299 = vadd.f32 %v181, %v298
    %300 = vmatprep.mubr.f32.mxu0 0.0
    %301 = vmatmul.mubr.f32.gmra.mrb[0].mxu0 %v107
    %v302 = vpop.f32.mrb[0].mxu0
    %v303 = vadd.f32 %v177, %v302
    %v304 = vpop.f32.mrb[0].mxu0
    %v305 = vadd.f32 %v181, %v304
    %306 = vdwg.mxu0
    %307 = vmatprep.subr.mxu0 %v111
    %308 = vmatpush1.msra.mxu0 %v110
    %309 = vmatprep.subr.mxu0 %v115
    %310 = vmatpush1.msra.mxu0 %v114
    %311 = vmatprep.subr.mxu0 %v119
    %312 = vmatpush1.msra.mxu0 %v118
    %313 = vmatprep.subr.mxu0 %v123
    %314 = vmatpush1.msra.mxu0 %v122
    %315 = vmatprep.subr.mxu0 %v127
    %316 = vmatpush1.msra.mxu0 %v126
    %317 = vmatprep.subr.mxu0 %v131
    %318 = vmatpush1.msra.mxu0 %v130
    %319 = vmatprep.subr.mxu0 %v135
    %320 = vmatpush1.msra.mxu0 %v134
    %321 = vmatprep.subr.mxu0 %v139
    %322 = vmatpush1.msra.mxu0 %v138
    %323 = vmatprep.subr.mxu0 %v143
    %324 = vmatpush1.msra.mxu0 %v142
    %325 = vmatprep.subr.mxu0 %v147
    %326 = vmatpush1.msra.mxu0 %v146
    %327 = vmatprep.subr.mxu0 %v151
    %328 = vmatpush1.msra.mxu0 %v150
    %329 = vmatprep.subr.mxu0 %v155
    %330 = vmatpush1.msra.mxu0 %v154
    %331 = vmatprep.subr.mxu0 %v159
    %332 = vmatpush1.msra.mxu0 %v158
    %333 = vmatprep.subr.mxu0 %v163
    %334 = vmatpush1.msra.mxu0 %v162
    %335 = vmatprep.subr.mxu0 %v167
    %336 = vmatpush1.msra.mxu0 %v166
    %337 = vmatprep.subr.mxu0 %v171
    %338 = vmatpush1.msra.mxu0 %v170
    %339 = vmatprep.subr.mxu0 0.0
    %340 = vmatpush1.msra.mxu0 0.0
    %341 = vmatprep.subr.mxu0 0.0
    %342 = vmatpush1.msra.mxu0 0.0
    %343 = vmatprep.subr.mxu0 0.0
    %344 = vmatpush1.msra.mxu0 0.0
    %345 = vmatprep.subr.mxu0 0.0
    %346 = vmatpush1.msra.mxu0 0.0
    %347 = vmatprep.subr.mxu0 0.0
    %348 = vmatpush1.msra.mxu0 0.0
    %349 = vmatprep.subr.mxu0 0.0
    %350 = vmatpush1.msra.mxu0 0.0
    %351 = vmatprep.subr.mxu0 0.0
    %352 = vmatpush1.msra.mxu0 0.0
    %353 = vmatprep.subr.mxu0 0.0
    %354 = vmatpush1.msra.mxu0 0.0
    %355 = vmatprep.subr.mxu0 0.0
    %356 = vmatpush1.msra.mxu0 0.0
    %357 = vmatprep.subr.mxu0 0.0
    %358 = vmatpush1.msra.mxu0 0.0
    %359 = vmatprep.subr.mxu0 0.0
    %360 = vmatpush1.msra.mxu0 0.0
    %361 = vmatprep.subr.mxu0 0.0
    %362 = vmatpush1.msra.mxu0 0.0
    %363 = vmatprep.subr.mxu0 0.0
    %364 = vmatpush1.msra.mxu0 0.0
    %365 = vmatprep.subr.mxu0 0.0
    %366 = vmatpush1.msra.mxu0 0.0
    %367 = vmatprep.subr.mxu0 0.0
    %368 = vmatpush1.msra.mxu0 0.0
    %369 = vmatprep.subr.mxu0 0.0
    %370 = vmatpush1.msra.mxu0 0.0
    %371 = vmatprep.mubr.f32.mxu0 0.0
    %372 = vmatmul.mubr.f32.gmra.mrb[0].mxu0 %v100
    %v373 = vpop.f32.mrb[0].mxu0
    %v374 = vadd.f32 %v185, %v373
    %v375 = vpop.f32.mrb[0].mxu0
    %v376 = vadd.f32 %v189, %v375
    %377 = vmatprep.mubr.f32.mxu0 0.0
    %378 = vmatmul.mubr.f32.gmra.mrb[0].mxu0 %v101
    %v379 = vpop.f32.mrb[0].mxu0
    %v380 = vadd.f32 %v185, %v379
    %v381 = vpop.f32.mrb[0].mxu0
    %v382 = vadd.f32 %v189, %v381
    %383 = vmatprep.mubr.f32.mxu0 0.0
    %384 = vmatmul.mubr.f32.gmra.mrb[0].mxu0 %v102
    %v385 = vpop.f32.mrb[0].mxu0
    %v386 = vadd.f32 %v185, %v385
    %v387 = vpop.f32.mrb[0].mxu0
    %v388 = vadd.f32 %v189, %v387
    %389 = vmatprep.mubr.f32.mxu0 0.0
    %390 = vmatmul.mubr.f32.gmra.mrb[0].mxu0 %v103
    %v391 = vpop.f32.mrb[0].mxu0
    %v392 = vadd.f32 %v185, %v391
    %v393 = vpop.f32.mrb[0].mxu0
    %v394 = vadd.f32 %v189, %v393
    %395 = vmatprep.mubr.f32.mxu0 0.0
    %396 = vmatmul.mubr.f32.gmra.mrb[0].mxu0 %v104
    %v397 = vpop.f32.mrb[0].mxu0
    %v398 = vadd.f32 %v185, %v397
    %v399 = vpop.f32.mrb[0].mxu0
    %v400 = vadd.f32 %v189, %v399
    %401 = vmatprep.mubr.f32.mxu0 0.0
    %402 = vmatmul.mubr.f32.gmra.mrb[0].mxu0 %v105
    %v403 = vpop.f32.mrb[0].mxu0
    %v404 = vadd.f32 %v185, %v403
    %v405 = vpop.f32.mrb[0].mxu0
    %v406 = vadd.f32 %v189, %v405
    %407 = vmatprep.mubr.f32.mxu0 0.0
    %408 = vmatmul.mubr.f32.gmra.mrb[0].mxu0 %v106
    %v409 = vpop.f32.mrb[0].mxu0
    %v410 = vadd.f32 %v185, %v409
    %v411 = vpop.f32.mrb[0].mxu0
    %v412 = vadd.f32 %v189, %v411
    %413 = vmatprep.mubr.f32.mxu0 0.0
    %414 = vmatmul.mubr.f32.gmra.mrb[0].mxu0 %v107
    %v415 = vpop.f32.mrb[0].mxu0
    %v416 = vadd.f32 %v185, %v415
    %v417 = vpop.f32.mrb[0].mxu0
    %v418 = vadd.f32 %v189, %v417
    %419 = vdwg.mxu0
    %420 = vst [vmem:[#allocation2] sm:$0xff] %v261
    %421 = vst [vmem:[#allocation2 + $0x8] sm:$0xff] %v263
    %422 = vst [vmem:[#allocation2 + $0x10] sm:$0xff] %v374
    %423 = vst [vmem:[#allocation2 + $0x18] sm:$0xff] %v376
    %424 = vst [vmem:[#allocation2 + $0x20] sm:$0xff] %v267
    %425 = vst [vmem:[#allocation2 + $0x28] sm:$0xff] %v269
    %426 = vst [vmem:[#allocation2 + $0x30] sm:$0xff] %v380
    %427 = vst [vmem:[#allocation2 + $0x38] sm:$0xff] %v382
    %428 = vst [vmem:[#allocation2 + $0x40] sm:$0xff] %v273
    %429 = vst [vmem:[#allocation2 + $0x48] sm:$0xff] %v275
    %430 = vst [vmem:[#allocation2 + $0x50] sm:$0xff] %v386
    %431 = vst [vmem:[#allocation2 + $0x58] sm:$0xff] %v388
    %432 = vst [vmem:[#allocation2 + $0x60] sm:$0xff] %v279
    %433 = vst [vmem:[#allocation2 + $0x68] sm:$0xff] %v281
    %434 = vst [vmem:[#allocation2 + $0x70] sm:$0xff] %v392
    %435 = vst [vmem:[#allocation2 + $0x78] sm:$0xff] %v394
    %436 = vst [vmem:[#allocation2 + $0x80] sm:$0xff] %v285
    %437 = vst [vmem:[#allocation2 + $0x88] sm:$0xff] %v287
    %438 = vst [vmem:[#allocation2 + $0x90] sm:$0xff] %v398
    %439 = vst [vmem:[#allocation2 + $0x98] sm:$0xff] %v400
    %440 = vst [vmem:[#allocation2 + $0xa0] sm:$0xff] %v291
    %441 = vst [vmem:[#allocation2 + $0xa8] sm:$0xff] %v293
    %442 = vst [vmem:[#allocation2 + $0xb0] sm:$0xff] %v404
    %443 = vst [vmem:[#allocation2 + $0xb8] sm:$0xff] %v406
    %444 = vst [vmem:[#allocation2 + $0xc0] sm:$0xff] %v297
    %445 = vst [vmem:[#allocation2 + $0xc8] sm:$0xff] %v299
    %446 = vst [vmem:[#allocation2 + $0xd0] sm:$0xff] %v410
    %447 = vst [vmem:[#allocation2 + $0xd8] sm:$0xff] %v412
    %448 = vst [vmem:[#allocation2 + $0xe0] sm:$0xff] %v303
    %449 = vst [vmem:[#allocation2 + $0xe8] sm:$0xff] %v305
    %450 = vst [vmem:[#allocation2 + $0xf0] sm:$0xff] %v416
    %451 = vst [vmem:[#allocation2 + $0xf8] sm:$0xff] %v418
    %v452 = vld [vmem:[%s6] sm:$0xff]
    %v453 = vld [vmem:[%s7] sm:$0xff]
    %s454 = smul.u32 0, 4
    %s455 = smul.addr %s454, 8
    %s456 = scalar_lea.vmem [#allocation2], %s455
    %v457 = vld [vmem:[%s456] sm:$0xff]
    %v458 = vld [vmem:[%s456 + $0x8] sm:$0xff]
    %v459 = vld [vmem:[%s456 + $0x10] sm:$0xff]
    %v460 = vld [vmem:[%s456 + $0x18] sm:$0xff]
    %v461 = vld [vmem:[#allocation8] sm:$0xff]
    %v462 = vld [vmem:[#allocation8 + $0x8] sm:$0xff]
    %v463 = vld [vmem:[#allocation8 + $0x10] sm:$0xff]
    %v464 = vld [vmem:[#allocation8 + $0x18] sm:$0xff]
    %v465 = vld [vmem:[#allocation8 + $0x20] sm:$0xff]
    %v466 = vld [vmem:[#allocation8 + $0x28] sm:$0xff]
    %v467 = vld [vmem:[#allocation8 + $0x30] sm:$0xff]
    %v468 = vld [vmem:[#allocation8 + $0x38] sm:$0xff]
    %v469 = vld [vmem:[#allocation8 + $0x40] sm:$0xff]
    %v470 = vld [vmem:[#allocation8 + $0x48] sm:$0xff]
    %v471 = vld [vmem:[#allocation8 + $0x50] sm:$0xff]
    %v472 = vld [vmem:[#allocation8 + $0x58] sm:$0xff]
    %v473 = vld [vmem:[#allocation8 + $0x60] sm:$0xff]
    %v474 = vld [vmem:[#allocation8 + $0x68] sm:$0xff]
    %v475 = vld [vmem:[#allocation8 + $0x70] sm:$0xff]
    %v476 = vld [vmem:[#allocation8 + $0x78] sm:$0xff]
    %v477 = vld [vmem:[#allocation8 + $0x80] sm:$0xff]
    %v478 = vld [vmem:[#allocation8 + $0x88] sm:$0xff]
    %v479 = vld [vmem:[#allocation8 + $0x90] sm:$0xff]
    %v480 = vld [vmem:[#allocation8 + $0x98] sm:$0xff]
    %v481 = vld [vmem:[#allocation8 + $0xa0] sm:$0xff]
    %v482 = vld [vmem:[#allocation8 + $0xa8] sm:$0xff]
    %v483 = vld [vmem:[#allocation8 + $0xb0] sm:$0xff]
    %v484 = vld [vmem:[#allocation8 + $0xb8] sm:$0xff]
    %v485 = vld [vmem:[#allocation8 + $0xc0] sm:$0xff]
    %v486 = vld [vmem:[#allocation8 + $0xc8] sm:$0xff]
    %v487 = vld [vmem:[#allocation8 + $0xd0] sm:$0xff]
    %v488 = vld [vmem:[#allocation8 + $0xd8] sm:$0xff]
    %v489 = vld [vmem:[#allocation8 + $0xe0] sm:$0xff]
    %v490 = vld [vmem:[#allocation8 + $0xe8] sm:$0xff]
    %v491 = vld [vmem:[#allocation8 + $0xf0] sm:$0xff]
    %v492 = vld [vmem:[#allocation8 + $0xf8] sm:$0xff]
    %v493 = vld [vmem:[#allocation8 + $0x100] sm:$0xff]
    %v494 = vld [vmem:[#allocation8 + $0x108] sm:$0xff]
    %v495 = vld [vmem:[#allocation8 + $0x110] sm:$0xff]
    %v496 = vld [vmem:[#allocation8 + $0x118] sm:$0xff]
    %v497 = vld [vmem:[#allocation8 + $0x120] sm:$0xff]
    %v498 = vld [vmem:[#allocation8 + $0x128] sm:$0xff]
    %v499 = vld [vmem:[#allocation8 + $0x130] sm:$0xff]
    %v500 = vld [vmem:[#allocation8 + $0x138] sm:$0xff]
    %v501 = vld [vmem:[#allocation8 + $0x140] sm:$0xff]
    %v502 = vld [vmem:[#allocation8 + $0x148] sm:$0xff]
    %v503 = vld [vmem:[#allocation8 + $0x150] sm:$0xff]
    %v504 = vld [vmem:[#allocation8 + $0x158] sm:$0xff]
    %v505 = vld [vmem:[#allocation8 + $0x160] sm:$0xff]
    %v506 = vld [vmem:[#allocation8 + $0x168] sm:$0xff]
    %v507 = vld [vmem:[#allocation8 + $0x170] sm:$0xff]
    %v508 = vld [vmem:[#allocation8 + $0x178] sm:$0xff]
    %v509 = vld [vmem:[#allocation8 + $0x180] sm:$0xff]
    %v510 = vld [vmem:[#allocation8 + $0x188] sm:$0xff]
    %v511 = vld [vmem:[#allocation8 + $0x190] sm:$0xff]
    %v512 = vld [vmem:[#allocation8 + $0x198] sm:$0xff]
    %v513 = vld [vmem:[#allocation8 + $0x1a0] sm:$0xff]
    %v514 = vld [vmem:[#allocation8 + $0x1a8] sm:$0xff]
    %v515 = vld [vmem:[#allocation8 + $0x1b0] sm:$0xff]
    %v516 = vld [vmem:[#allocation8 + $0x1b8] sm:$0xff]
    %v517 = vld [vmem:[#allocation8 + $0x1c0] sm:$0xff]
    %v518 = vld [vmem:[#allocation8 + $0x1c8] sm:$0xff]
    %v519 = vld [vmem:[#allocation8 + $0x1d0] sm:$0xff]
    %v520 = vld [vmem:[#allocation8 + $0x1d8] sm:$0xff]
    %v521 = vld [vmem:[#allocation8 + $0x1e0] sm:$0xff]
    %v522 = vld [vmem:[#allocation8 + $0x1e8] sm:$0xff]
    %v523 = vld [vmem:[#allocation8 + $0x1f0] sm:$0xff]
    %v524 = vld [vmem:[#allocation8 + $0x1f8] sm:$0xff]
    %525 = vmatprep.subr.mxu0 %v462
    %526 = vmatpush1.msra.mxu0 %v461
    %527 = vmatprep.subr.mxu0 %v466
    %528 = vmatpush1.msra.mxu0 %v465
    %529 = vmatprep.subr.mxu0 %v470
    %530 = vmatpush1.msra.mxu0 %v469
    %531 = vmatprep.subr.mxu0 %v474
    %532 = vmatpush1.msra.mxu0 %v473
    %533 = vmatprep.subr.mxu0 %v478
    %534 = vmatpush1.msra.mxu0 %v477
    %535 = vmatprep.subr.mxu0 %v482
    %536 = vmatpush1.msra.mxu0 %v481
    %537 = vmatprep.subr.mxu0 %v486
    %538 = vmatpush1.msra.mxu0 %v485
    %539 = vmatprep.subr.mxu0 %v490
    %540 = vmatpush1.msra.mxu0 %v489
    %541 = vmatprep.subr.mxu0 %v494
    %542 = vmatpush1.msra.mxu0 %v493
    %543 = vmatprep.subr.mxu0 %v498
    %544 = vmatpush1.msra.mxu0 %v497
    %545 = vmatprep.subr.mxu0 %v502
    %546 = vmatpush1.msra.mxu0 %v501
    %547 = vmatprep.subr.mxu0 %v506
    %548 = vmatpush1.msra.mxu0 %v505
    %549 = vmatprep.subr.mxu0 %v510
    %550 = vmatpush1.msra.mxu0 %v509
    %551 = vmatprep.subr.mxu0 %v514
    %552 = vmatpush1.msra.mxu0 %v513
    %553 = vmatprep.subr.mxu0 %v518
    %554 = vmatpush1.msra.mxu0 %v517
    %555 = vmatprep.subr.mxu0 %v522
    %556 = vmatpush1.msra.mxu0 %v521
    %557 = vmatprep.subr.mxu0 0.0
    %558 = vmatpush1.msra.mxu0 0.0
    %559 = vmatprep.subr.mxu0 0.0
    %560 = vmatpush1.msra.mxu0 0.0
    %561 = vmatprep.subr.mxu0 0.0
    %562 = vmatpush1.msra.mxu0 0.0
    %563 = vmatprep.subr.mxu0 0.0
    %564 = vmatpush1.msra.mxu0 0.0
    %565 = vmatprep.subr.mxu0 0.0
    %566 = vmatpush1.msra.mxu0 0.0
    %567 = vmatprep.subr.mxu0 0.0
    %568 = vmatpush1.msra.mxu0 0.0
    %569 = vmatprep.subr.mxu0 0.0
    %570 = vmatpush1.msra.mxu0 0.0
    %571 = vmatprep.subr.mxu0 0.0
    %572 = vmatpush1.msra.mxu0 0.0
    %573 = vmatprep.subr.mxu0 0.0
    %574 = vmatpush1.msra.mxu0 0.0
    %575 = vmatprep.subr.mxu0 0.0
    %576 = vmatpush1.msra.mxu0 0.0
    %577 = vmatprep.subr.mxu0 0.0
    %578 = vmatpush1.msra.mxu0 0.0
    %579 = vmatprep.subr.mxu0 0.0
    %580 = vmatpush1.msra.mxu0 0.0
    %581 = vmatprep.subr.mxu0 0.0
    %582 = vmatpush1.msra.mxu0 0.0
    %583 = vmatprep.subr.mxu0 0.0
    %584 = vmatpush1.msra.mxu0 0.0
    %585 = vmatprep.subr.mxu0 0.0
    %586 = vmatpush1.msra.mxu0 0.0
    %587 = vmatprep.subr.mxu0 0.0
    %588 = vmatpush1.msra.mxu0 0.0
    %589 = vmatprep.mubr.f32.mxu0 0.0
    %590 = vmatmul.mubr.f32.gmra.mrb[0].mxu0 %v452
    %v591 = vpop.f32.mrb[0].mxu0
    %v592 = vadd.f32 0.0, %v591
    %v593 = vpop.f32.mrb[0].mxu0
    %v594 = vadd.f32 0.0, %v593
    %595 = vdwg.mxu0
    %596 = vmatprep.subr.mxu0 %v464
    %597 = vmatpush1.msra.mxu0 %v463
    %598 = vmatprep.subr.mxu0 %v468
    %599 = vmatpush1.msra.mxu0 %v467
    %600 = vmatprep.subr.mxu0 %v472
    %601 = vmatpush1.msra.mxu0 %v471
    %602 = vmatprep.subr.mxu0 %v476
    %603 = vmatpush1.msra.mxu0 %v475
    %604 = vmatprep.subr.mxu0 %v480
    %605 = vmatpush1.msra.mxu0 %v479
    %606 = vmatprep.subr.mxu0 %v484
    %607 = vmatpush1.msra.mxu0 %v483
    %608 = vmatprep.subr.mxu0 %v488
    %609 = vmatpush1.msra.mxu0 %v487
    %610 = vmatprep.subr.mxu0 %v492
    %611 = vmatpush1.msra.mxu0 %v491
    %612 = vmatprep.subr.mxu0 %v496
    %613 = vmatpush1.msra.mxu0 %v495
    %614 = vmatprep.subr.mxu0 %v500
    %615 = vmatpush1.msra.mxu0 %v499
    %616 = vmatprep.subr.mxu0 %v504
    %617 = vmatpush1.msra.mxu0 %v503
    %618 = vmatprep.subr.mxu0 %v508
    %619 = vmatpush1.msra.mxu0 %v507
    %620 = vmatprep.subr.mxu0 %v512
    %621 = vmatpush1.msra.mxu0 %v511
    %622 = vmatprep.subr.mxu0 %v516
    %623 = vmatpush1.msra.mxu0 %v515
    %624 = vmatprep.subr.mxu0 %v520
    %625 = vmatpush1.msra.mxu0 %v519
    %626 = vmatprep.subr.mxu0 %v524
    %627 = vmatpush1.msra.mxu0 %v523
    %628 = vmatprep.subr.mxu0 0.0
    %629 = vmatpush1.msra.mxu0 0.0
    %630 = vmatprep.subr.mxu0 0.0
    %631 = vmatpush1.msra.mxu0 0.0
    %632 = vmatprep.subr.mxu0 0.0
    %633 = vmatpush1.msra.mxu0 0.0
    %634 = vmatprep.subr.mxu0 0.0
    %635 = vmatpush1.msra.mxu0 0.0
    %636 = vmatprep.subr.mxu0 0.0
    %637 = vmatpush1.msra.mxu0 0.0
    %638 = vmatprep.subr.mxu0 0.0
    %639 = vmatpush1.msra.mxu0 0.0
    %640 = vmatprep.subr.mxu0 0.0
    %641 = vmatpush1.msra.mxu0 0.0
    %642 = vmatprep.subr.mxu0 0.0
    %643 = vmatpush1.msra.mxu0 0.0
    %644 = vmatprep.subr.mxu0 0.0
    %645 = vmatpush1.msra.mxu0 0.0
    %646 = vmatprep.subr.mxu0 0.0
    %647 = vmatpush1.msra.mxu0 0.0
    %648 = vmatprep.subr.mxu0 0.0
    %649 = vmatpush1.msra.mxu0 0.0
    %650 = vmatprep.subr.mxu0 0.0
    %651 = vmatpush1.msra.mxu0 0.0
    %652 = vmatprep.subr.mxu0 0.0
    %653 = vmatpush1.msra.mxu0 0.0
    %654 = vmatprep.subr.mxu0 0.0
    %655 = vmatpush1.msra.mxu0 0.0
    %656 = vmatprep.subr.mxu0 0.0
    %657 = vmatpush1.msra.mxu0 0.0
    %658 = vmatprep.subr.mxu0 0.0
    %659 = vmatpush1.msra.mxu0 0.0
    %660 = vmatprep.mubr.f32.mxu0 0.0
    %661 = vmatmul.mubr.f32.gmra.mrb[0].mxu0 %v452
    %v662 = vpop.f32.mrb[0].mxu0
    %v663 = vadd.f32 0.0, %v662
    %v664 = vpop.f32.mrb[0].mxu0
    %v665 = vadd.f32 0.0, %v664
    %666 = vdwg.mxu0
    %v667 = vadd.f32 %v457, %v592
    %v668 = vadd.f32 %v458, %v594
    %v669 = vadd.f32 %v459, %v663
    %v670 = vadd.f32 %v460, %v665
    %v671 = vmul.f32 %v667, 0.5
    %v672 = vtanh.pop %v671
    %v673 = vmul.f32 %v672, 0.5
    %v674 = vadd.f32 %v673, 0.5
    %v675 = vmul.f32 %v668, 0.5
    %v676 = vtanh.pop %v675
    %v677 = vmul.f32 %v676, 0.5
    %v678 = vadd.f32 %v677, 0.5
    %v679 = vtanh.pop %v669
    %v680 = vmul.f32 %v670, 0.5
    %v681 = vtanh.pop %v680
    %v682 = vmul.f32 %v681, 0.5
    %v683 = vadd.f32 %v682, 0.5
    %v684 = vmul.f32 %v678, %v453
    %v685 = vmul.f32 %v674, %v679
    %v686 = vadd.f32 %v684, %v685
    %v687 = vtanh.pop %v686
    %v688 = vmul.f32 %v683, %v687
    %s689 = smul.u32 1, 4
    %s690 = smul.addr %s689, 8
    %s691 = scalar_lea.vmem [#allocation2], %s690
    %v692 = vld [vmem:[%s691] sm:$0xff]
    %v693 = vld [vmem:[%s691 + $0x8] sm:$0xff]
    %v694 = vld [vmem:[%s691 + $0x10] sm:$0xff]
    %v695 = vld [vmem:[%s691 + $0x18] sm:$0xff]
    %696 = vmatprep.subr.mxu0 %v462
    %697 = vmatpush1.msra.mxu0 %v461
    %698 = vmatprep.subr.mxu0 %v466
    %699 = vmatpush1.msra.mxu0 %v465
    %700 = vmatprep.subr.mxu0 %v470
    %701 = vmatpush1.msra.mxu0 %v469
    %702 = vmatprep.subr.mxu0 %v474
    %703 = vmatpush1.msra.mxu0 %v473
    %704 = vmatprep.subr.mxu0 %v478
    %705 = vmatpush1.msra.mxu0 %v477
    %706 = vmatprep.subr.mxu0 %v482
    %707 = vmatpush1.msra.mxu0 %v481
    %708 = vmatprep.subr.mxu0 %v486
    %709 = vmatpush1.msra.mxu0 %v485
    %710 = vmatprep.subr.mxu0 %v490
    %711 = vmatpush1.msra.mxu0 %v489
    %712 = vmatprep.subr.mxu0 %v494
    %713 = vmatpush1.msra.mxu0 %v493
    %714 = vmatprep.subr.mxu0 %v498
    %715 = vmatpush1.msra.mxu0 %v497
    %716 = vmatprep.subr.mxu0 %v502
    %717 = vmatpush1.msra.mxu0 %v501
    %718 = vmatprep.subr.mxu0 %v506
    %719 = vmatpush1.msra.mxu0 %v505
    %720 = vmatprep.subr.mxu0 %v510
    %721 = vmatpush1.msra.mxu0 %v509
    %722 = vmatprep.subr.mxu0 %v514
    %723 = vmatpush1.msra.mxu0 %v513
    %724 = vmatprep.subr.mxu0 %v518
    %725 = vmatpush1.msra.mxu0 %v517
    %726 = vmatprep.subr.mxu0 %v522
    %727 = vmatpush1.msra.mxu0 %v521
    %728 = vmatprep.subr.mxu0 0.0
    %729 = vmatpush1.msra.mxu0 0.0
    %730 = vmatprep.subr.mxu0 0.0
    %731 = vmatpush1.msra.mxu0 0.0
    %732 = vmatprep.subr.mxu0 0.0
    %733 = vmatpush1.msra.mxu0 0.0
    %734 = vmatprep.subr.mxu0 0.0
    %735 = vmatpush1.msra.mxu0 0.0
    %736 = vmatprep.subr.mxu0 0.0
    %737 = vmatpush1.msra.mxu0 0.0
    %738 = vmatprep.subr.mxu0 0.0
    %739 = vmatpush1.msra.mxu0 0.0
    %740 = vmatprep.subr.mxu0 0.0
    %741 = vmatpush1.msra.mxu0 0.0
    %742 = vmatprep.subr.mxu0 0.0
    %743 = vmatpush1.msra.mxu0 0.0
    %744 = vmatprep.subr.mxu0 0.0
    %745 = vmatpush1.msra.mxu0 0.0
    %746 = vmatprep.subr.mxu0 0.0
    %747 = vmatpush1.msra.mxu0 0.0
    %748 = vmatprep.subr.mxu0 0.0
    %749 = vmatpush1.msra.mxu0 0.0
    %750 = vmatprep.subr.mxu0 0.0
    %751 = vmatpush1.msra.mxu0 0.0
    %752 = vmatprep.subr.mxu0 0.0
    %753 = vmatpush1.msra.mxu0 0.0
    %754 = vmatprep.subr.mxu0 0.0
    %755 = vmatpush1.msra.mxu0 0.0
    %756 = vmatprep.subr.mxu0 0.0
    %757 = vmatpush1.msra.mxu0 0.0
    %758 = vmatprep.subr.mxu0 0.0
    %759 = vmatpush1.msra.mxu0 0.0
    %760 = vmatprep.mubr.f32.mxu0 0.0
    %761 = vmatmul.mubr.f32.gmra.mrb[0].mxu0 %v688
    %v762 = vpop.f32.mrb[0].mxu0
    %v763 = vadd.f32 0.0, %v762
    %v764 = vpop.f32.mrb[0].mxu0
    %v765 = vadd.f32 0.0, %v764
    %766 = vdwg.mxu0
    %767 = vmatprep.subr.mxu0 %v464
    %768 = vmatpush1.msra.mxu0 %v463
    %769 = vmatprep.subr.mxu0 %v468
    %770 = vmatpush1.msra.mxu0 %v467
    %771 = vmatprep.subr.mxu0 %v472
    %772 = vmatpush1.msra.mxu0 %v471
    %773 = vmatprep.subr.mxu0 %v476
    %774 = vmatpush1.msra.mxu0 %v475
    %775 = vmatprep.subr.mxu0 %v480
    %776 = vmatpush1.msra.mxu0 %v479
    %777 = vmatprep.subr.mxu0 %v484
    %778 = vmatpush1.msra.mxu0 %v483
    %779 = vmatprep.subr.mxu0 %v488
    %780 = vmatpush1.msra.mxu0 %v487
    %781 = vmatprep.subr.mxu0 %v492
    %782 = vmatpush1.msra.mxu0 %v491
    %783 = vmatprep.subr.mxu0 %v496
    %784 = vmatpush1.msra.mxu0 %v495
    %785 = vmatprep.subr.mxu0 %v500
    %786 = vmatpush1.msra.mxu0 %v499
    %787 = vmatprep.subr.mxu0 %v504
    %788 = vmatpush1.msra.mxu0 %v503
    %789 = vmatprep.subr.mxu0 %v508
    %790 = vmatpush1.msra.mxu0 %v507
    %791 = vmatprep.subr.mxu0 %v512
    %792 = vmatpush1.msra.mxu0 %v511
    %793 = vmatprep.subr.mxu0 %v516
    %794 = vmatpush1.msra.mxu0 %v515
    %795 = vmatprep.subr.mxu0 %v520
    %796 = vmatpush1.msra.mxu0 %v519
    %797 = vmatprep.subr.mxu0 %v524
    %798 = vmatpush1.msra.mxu0 %v523
    %799 = vmatprep.subr.mxu0 0.0
    %800 = vmatpush1.msra.mxu0 0.0
    %801 = vmatprep.subr.mxu0 0.0
    %802 = vmatpush1.msra.mxu0 0.0
    %803 = vmatprep.subr.mxu0 0.0
    %804 = vmatpush1.msra.mxu0 0.0
    %805 = vmatprep.subr.mxu0 0.0
    %806 = vmatpush1.msra.mxu0 0.0
    %807 = vmatprep.subr.mxu0 0.0
    %808 = vmatpush1.msra.mxu0 0.0
    %809 = vmatprep.subr.mxu0 0.0
    %810 = vmatpush1.msra.mxu0 0.0
    %811 = vmatprep.subr.mxu0 0.0
    %812 = vmatpush1.msra.mxu0 0.0
    %813 = vmatprep.subr.mxu0 0.0
    %814 = vmatpush1.msra.mxu0 0.0
    %815 = vmatprep.subr.mxu0 0.0
    %816 = vmatpush1.msra.mxu0 0.0
    %817 = vmatprep.subr.mxu0 0.0
    %818 = vmatpush1.msra.mxu0 0.0
    %819 = vmatprep.subr.mxu0 0.0
    %820 = vmatpush1.msra.mxu0 0.0
    %821 = vmatprep.subr.mxu0 0.0
    %822 = vmatpush1.msra.mxu0 0.0
    %823 = vmatprep.subr.mxu0 0.0
    %824 = vmatpush1.msra.mxu0 0.0
    %825 = vmatprep.subr.mxu0 0.0
    %826 = vmatpush1.msra.mxu0 0.0
    %827 = vmatprep.subr.mxu0 0.0
    %828 = vmatpush1.msra.mxu0 0.0
    %829 = vmatprep.subr.mxu0 0.0
    %830 = vmatpush1.msra.mxu0 0.0
    %831 = vmatprep.mubr.f32.mxu0 0.0
    %832 = vmatmul.mubr.f32.gmra.mrb[0].mxu0 %v688
    %v833 = vpop.f32.mrb[0].mxu0
    %v834 = vadd.f32 0.0, %v833
    %v835 = vpop.f32.mrb[0].mxu0
    %v836 = vadd.f32 0.0, %v835
    %837 = vdwg.mxu0
    %v838 = vadd.f32 %v692, %v763
    %v839 = vadd.f32 %v693, %v765
    %v840 = vadd.f32 %v694, %v834
    %v841 = vadd.f32 %v695, %v836
    %v842 = vmul.f32 %v838, 0.5
    %v843 = vtanh.pop %v842
    %v844 = vmul.f32 %v843, 0.5
    %v845 = vadd.f32 %v844, 0.5
    %v846 = vmul.f32 %v839, 0.5
    %v847 = vtanh.pop %v846
    %v848 = vmul.f32 %v847, 0.5
    %v849 = vadd.f32 %v848, 0.5
    %v850 = vtanh.pop %v840
    %v851 = vmul.f32 %v841, 0.5
    %v852 = vtanh.pop %v851
    %v853 = vmul.f32 %v852, 0.5
    %v854 = vadd.f32 %v853, 0.5
    %v855 = vmul.f32 %v849, %v686
    %v856 = vmul.f32 %v845, %v850
    %v857 = vadd.f32 %v855, %v856
    %v858 = vtanh.pop %v857
    %v859 = vmul.f32 %v854, %v858
    %s860 = smul.u32 2, 4
    %s861 = smul.addr %s860, 8
    %s862 = scalar_lea.vmem [#allocation2], %s861
    %v863 = vld [vmem:[%s862] sm:$0xff]
    %v864 = vld [vmem:[%s862 + $0x8] sm:$0xff]
    %v865 = vld [vmem:[%s862 + $0x10] sm:$0xff]
    %v866 = vld [vmem:[%s862 + $0x18] sm:$0xff]
    %867 = vmatprep.subr.mxu0 %v462
    %868 = vmatpush1.msra.mxu0 %v461
    %869 = vmatprep.subr.mxu0 %v466
    %870 = vmatpush1.msra.mxu0 %v465
    %871 = vmatprep.subr.mxu0 %v470
    %872 = vmatpush1.msra.mxu0 %v469
    %873 = vmatprep.subr.mxu0 %v474
    %874 = vmatpush1.msra.mxu0 %v473
    %875 = vmatprep.subr.mxu0 %v478
    %876 = vmatpush1.msra.mxu0 %v477
    %877 = vmatprep.subr.mxu0 %v482
    %878 = vmatpush1.msra.mxu0 %v481
    %879 = vmatprep.subr.mxu0 %v486
    %880 = vmatpush1.msra.mxu0 %v485
    %881 = vmatprep.subr.mxu0 %v490
    %882 = vmatpush1.msra.mxu0 %v489
    %883 = vmatprep.subr.mxu0 %v494
    %884 = vmatpush1.msra.mxu0 %v493
    %885 = vmatprep.subr.mxu0 %v498
    %886 = vmatpush1.msra.mxu0 %v497
    %887 = vmatprep.subr.mxu0 %v502
    %888 = vmatpush1.msra.mxu0 %v501
    %889 = vmatprep.subr.mxu0 %v506
    %890 = vmatpush1.msra.mxu0 %v505
    %891 = vmatprep.subr.mxu0 %v510
    %892 = vmatpush1.msra.mxu0 %v509
    %893 = vmatprep.subr.mxu0 %v514
    %894 = vmatpush1.msra.mxu0 %v513
    %895 = vmatprep.subr.mxu0 %v518
    %896 = vmatpush1.msra.mxu0 %v517
    %897 = vmatprep.subr.mxu0 %v522
    %898 = vmatpush1.msra.mxu0 %v521
    %899 = vmatprep.subr.mxu0 0.0
    %900 = vmatpush1.msra.mxu0 0.0
    %901 = vmatprep.subr.mxu0 0.0
    %902 = vmatpush1.msra.mxu0 0.0
    %903 = vmatprep.subr.mxu0 0.0
    %904 = vmatpush1.msra.mxu0 0.0
    %905 = vmatprep.subr.mxu0 0.0
    %906 = vmatpush1.msra.mxu0 0.0
    %907 = vmatprep.subr.mxu0 0.0
    %908 = vmatpush1.msra.mxu0 0.0
    %909 = vmatprep.subr.mxu0 0.0
    %910 = vmatpush1.msra.mxu0 0.0
    %911 = vmatprep.subr.mxu0 0.0
    %912 = vmatpush1.msra.mxu0 0.0
    %913 = vmatprep.subr.mxu0 0.0
    %914 = vmatpush1.msra.mxu0 0.0
    %915 = vmatprep.subr.mxu0 0.0
    %916 = vmatpush1.msra.mxu0 0.0
    %917 = vmatprep.subr.mxu0 0.0
    %918 = vmatpush1.msra.mxu0 0.0
    %919 = vmatprep.subr.mxu0 0.0
    %920 = vmatpush1.msra.mxu0 0.0
    %921 = vmatprep.subr.mxu0 0.0
    %922 = vmatpush1.msra.mxu0 0.0
    %923 = vmatprep.subr.mxu0 0.0
    %924 = vmatpush1.msra.mxu0 0.0
    %925 = vmatprep.subr.mxu0 0.0
    %926 = vmatpush1.msra.mxu0 0.0
    %927 = vmatprep.subr.mxu0 0.0
    %928 = vmatpush1.msra.mxu0 0.0
    %929 = vmatprep.subr.mxu0 0.0
    %930 = vmatpush1.msra.mxu0 0.0
    %931 = vmatprep.mubr.f32.mxu0 0.0
    %932 = vmatmul.mubr.f32.gmra.mrb[0].mxu0 %v859
    %v933 = vpop.f32.mrb[0].mxu0
    %v934 = vadd.f32 0.0, %v933
    %v935 = vpop.f32.mrb[0].mxu0
    %v936 = vadd.f32 0.0, %v935
    %937 = vdwg.mxu0
    %938 = vmatprep.subr.mxu0 %v464
    %939 = vmatpush1.msra.mxu0 %v463
    %940 = vmatprep.subr.mxu0 %v468
    %941 = vmatpush1.msra.mxu0 %v467
    %942 = vmatprep.subr.mxu0 %v472
    %943 = vmatpush1.msra.mxu0 %v471
    %944 = vmatprep.subr.mxu0 %v476
    %945 = vmatpush1.msra.mxu0 %v475
    %946 = vmatprep.subr.mxu0 %v480
    %947 = vmatpush1.msra.mxu0 %v479
    %948 = vmatprep.subr.mxu0 %v484
    %949 = vmatpush1.msra.mxu0 %v483
    %950 = vmatprep.subr.mxu0 %v488
    %951 = vmatpush1.msra.mxu0 %v487
    %952 = vmatprep.subr.mxu0 %v492
    %953 = vmatpush1.msra.mxu0 %v491
    %954 = vmatprep.subr.mxu0 %v496
    %955 = vmatpush1.msra.mxu0 %v495
    %956 = vmatprep.subr.mxu0 %v500
    %957 = vmatpush1.msra.mxu0 %v499
    %958 = vmatprep.subr.mxu0 %v504
    %959 = vmatpush1.msra.mxu0 %v503
    %960 = vmatprep.subr.mxu0 %v508
    %961 = vmatpush1.msra.mxu0 %v507
    %962 = vmatprep.subr.mxu0 %v512
    %963 = vmatpush1.msra.mxu0 %v511
    %964 = vmatprep.subr.mxu0 %v516
    %965 = vmatpush1.msra.mxu0 %v515
    %966 = vmatprep.subr.mxu0 %v520
    %967 = vmatpush1.msra.mxu0 %v519
    %968 = vmatprep.subr.mxu0 %v524
    %969 = vmatpush1.msra.mxu0 %v523
    %970 = vmatprep.subr.mxu0 0.0
    %971 = vmatpush1.msra.mxu0 0.0
    %972 = vmatprep.subr.mxu0 0.0
    %973 = vmatpush1.msra.mxu0 0.0
    %974 = vmatprep.subr.mxu0 0.0
    %975 = vmatpush1.msra.mxu0 0.0
    %976 = vmatprep.subr.mxu0 0.0
    %977 = vmatpush1.msra.mxu0 0.0
    %978 = vmatprep.subr.mxu0 0.0
    %979 = vmatpush1.msra.mxu0 0.0
    %980 = vmatprep.subr.mxu0 0.0
    %981 = vmatpush1.msra.mxu0 0.0
    %982 = vmatprep.subr.mxu0 0.0
    %983 = vmatpush1.msra.mxu0 0.0
    %984 = vmatprep.subr.mxu0 0.0
    %985 = vmatpush1.msra.mxu0 0.0
    %986 = vmatprep.subr.mxu0 0.0
    %987 = vmatpush1.msra.mxu0 0.0
    %988 = vmatprep.subr.mxu0 0.0
    %989 = vmatpush1.msra.mxu0 0.0
    %990 = vmatprep.subr.mxu0 0.0
    %991 = vmatpush1.msra.mxu0 0.0
    %992 = vmatprep.subr.mxu0 0.0
    %993 = vmatpush1.msra.mxu0 0.0
    %994 = vmatprep.subr.mxu0 0.0
    %995 = vmatpush1.msra.mxu0 0.0
    %996 = vmatprep.subr.mxu0 0.0
    %997 = vmatpush1.msra.mxu0 0.0
    %998 = vmatprep.subr.mxu0 0.0
    %999 = vmatpush1.msra.mxu0 0.0
    %1000 = vmatprep.subr.mxu0 0.0
    %1001 = vmatpush1.msra.mxu0 0.0
    %1002 = vmatprep.mubr.f32.mxu0 0.0
    %1003 = vmatmul.mubr.f32.gmra.mrb[0].mxu0 %v859
    %v1004 = vpop.f32.mrb[0].mxu0
    %v1005 = vadd.f32 0.0, %v1004
    %v1006 = vpop.f32.mrb[0].mxu0
    %v1007 = vadd.f32 0.0, %v1006
    %1008 = vdwg.mxu0
    %v1009 = vadd.f32 %v863, %v934
    %v1010 = vadd.f32 %v864, %v936
    %v1011 = vadd.f32 %v865, %v1005
    %v1012 = vadd.f32 %v866, %v1007
    %v1013 = vmul.f32 %v1009, 0.5
    %v1014 = vtanh.pop %v1013
    %v1015 = vmul.f32 %v1014, 0.5
    %v1016 = vadd.f32 %v1015, 0.5
    %v1017 = vmul.f32 %v1010, 0.5
    %v1018 = vtanh.pop %v1017
    %v1019 = vmul.f32 %v1018, 0.5
    %v1020 = vadd.f32 %v1019, 0.5
    %v1021 = vtanh.pop %v1011
    %v1022 = vmul.f32 %v1012, 0.5
    %v1023 = vtanh.pop %v1022
    %v1024 = vmul.f32 %v1023, 0.5
    %v1025 = vadd.f32 %v1024, 0.5
    %v1026 = vmul.f32 %v1020, %v857
    %v1027 = vmul.f32 %v1016, %v1021
    %v1028 = vadd.f32 %v1026, %v1027
    %v1029 = vtanh.pop %v1028
    %v1030 = vmul.f32 %v1025, %v1029
    %s1031 = smul.u32 3, 4
    %s1032 = smul.addr %s1031, 8
    %s1033 = scalar_lea.vmem [#allocation2], %s1032
    %v1034 = vld [vmem:[%s1033] sm:$0xff]
    %v1035 = vld [vmem:[%s1033 + $0x8] sm:$0xff]
    %v1036 = vld [vmem:[%s1033 + $0x10] sm:$0xff]
    %v1037 = vld [vmem:[%s1033 + $0x18] sm:$0xff]
    %1038 = vmatprep.subr.mxu0 %v462
    %1039 = vmatpush1.msra.mxu0 %v461
    %1040 = vmatprep.subr.mxu0 %v466
    %1041 = vmatpush1.msra.mxu0 %v465
    %1042 = vmatprep.subr.mxu0 %v470
    %1043 = vmatpush1.msra.mxu0 %v469
    %1044 = vmatprep.subr.mxu0 %v474
    %1045 = vmatpush1.msra.mxu0 %v473
    %1046 = vmatprep.subr.mxu0 %v478
    %1047 = vmatpush1.msra.mxu0 %v477
    %1048 = vmatprep.subr.mxu0 %v482
    %1049 = vmatpush1.msra.mxu0 %v481
    %1050 = vmatprep.subr.mxu0 %v486
    %1051 = vmatpush1.msra.mxu0 %v485
    %1052 = vmatprep.subr.mxu0 %v490
    %1053 = vmatpush1.msra.mxu0 %v489
    %1054 = vmatprep.subr.mxu0 %v494
    %1055 = vmatpush1.msra.mxu0 %v493
    %1056 = vmatprep.subr.mxu0 %v498
    %1057 = vmatpush1.msra.mxu0 %v497
    %1058 = vmatprep.subr.mxu0 %v502
    %1059 = vmatpush1.msra.mxu0 %v501
    %1060 = vmatprep.subr.mxu0 %v506
    %1061 = vmatpush1.msra.mxu0 %v505
    %1062 = vmatprep.subr.mxu0 %v510
    %1063 = vmatpush1.msra.mxu0 %v509
    %1064 = vmatprep.subr.mxu0 %v514
    %1065 = vmatpush1.msra.mxu0 %v513
    %1066 = vmatprep.subr.mxu0 %v518
    %1067 = vmatpush1.msra.mxu0 %v517
    %1068 = vmatprep.subr.mxu0 %v522
    %1069 = vmatpush1.msra.mxu0 %v521
    %1070 = vmatprep.subr.mxu0 0.0
    %1071 = vmatpush1.msra.mxu0 0.0
    %1072 = vmatprep.subr.mxu0 0.0
    %1073 = vmatpush1.msra.mxu0 0.0
    %1074 = vmatprep.subr.mxu0 0.0
    %1075 = vmatpush1.msra.mxu0 0.0
    %1076 = vmatprep.subr.mxu0 0.0
    %1077 = vmatpush1.msra.mxu0 0.0
    %1078 = vmatprep.subr.mxu0 0.0
    %1079 = vmatpush1.msra.mxu0 0.0
    %1080 = vmatprep.subr.mxu0 0.0
    %1081 = vmatpush1.msra.mxu0 0.0
    %1082 = vmatprep.subr.mxu0 0.0
    %1083 = vmatpush1.msra.mxu0 0.0
    %1084 = vmatprep.subr.mxu0 0.0
    %1085 = vmatpush1.msra.mxu0 0.0
    %1086 = vmatprep.subr.mxu0 0.0
    %1087 = vmatpush1.msra.mxu0 0.0
    %1088 = vmatprep.subr.mxu0 0.0
    %1089 = vmatpush1.msra.mxu0 0.0
    %1090 = vmatprep.subr.mxu0 0.0
    %1091 = vmatpush1.msra.mxu0 0.0
    %1092 = vmatprep.subr.mxu0 0.0
    %1093 = vmatpush1.msra.mxu0 0.0
    %1094 = vmatprep.subr.mxu0 0.0
    %1095 = vmatpush1.msra.mxu0 0.0
    %1096 = vmatprep.subr.mxu0 0.0
    %1097 = vmatpush1.msra.mxu0 0.0
    %1098 = vmatprep.subr.mxu0 0.0
    %1099 = vmatpush1.msra.mxu0 0.0
    %1100 = vmatprep.subr.mxu0 0.0
    %1101 = vmatpush1.msra.mxu0 0.0
    %1102 = vmatprep.mubr.f32.mxu0 0.0
    %1103 = vmatmul.mubr.f32.gmra.mrb[0].mxu0 %v1030
    %v1104 = vpop.f32.mrb[0].mxu0
    %v1105 = vadd.f32 0.0, %v1104
    %v1106 = vpop.f32.mrb[0].mxu0
    %v1107 = vadd.f32 0.0, %v1106
    %1108 = vdwg.mxu0
    %1109 = vmatprep.subr.mxu0 %v464
    %1110 = vmatpush1.msra.mxu0 %v463
    %1111 = vmatprep.subr.mxu0 %v468
    %1112 = vmatpush1.msra.mxu0 %v467
    %1113 = vmatprep.subr.mxu0 %v472
    %1114 = vmatpush1.msra.mxu0 %v471
    %1115 = vmatprep.subr.mxu0 %v476
    %1116 = vmatpush1.msra.mxu0 %v475
    %1117 = vmatprep.subr.mxu0 %v480
    %1118 = vmatpush1.msra.mxu0 %v479
    %1119 = vmatprep.subr.mxu0 %v484
    %1120 = vmatpush1.msra.mxu0 %v483
    %1121 = vmatprep.subr.mxu0 %v488
    %1122 = vmatpush1.msra.mxu0 %v487
    %1123 = vmatprep.subr.mxu0 %v492
    %1124 = vmatpush1.msra.mxu0 %v491
    %1125 = vmatprep.subr.mxu0 %v496
    %1126 = vmatpush1.msra.mxu0 %v495
    %1127 = vmatprep.subr.mxu0 %v500
    %1128 = vmatpush1.msra.mxu0 %v499
    %1129 = vmatprep.subr.mxu0 %v504
    %1130 = vmatpush1.msra.mxu0 %v503
    %1131 = vmatprep.subr.mxu0 %v508
    %1132 = vmatpush1.msra.mxu0 %v507
    %1133 = vmatprep.subr.mxu0 %v512
    %1134 = vmatpush1.msra.mxu0 %v511
    %1135 = vmatprep.subr.mxu0 %v516
    %1136 = vmatpush1.msra.mxu0 %v515
    %1137 = vmatprep.subr.mxu0 %v520
    %1138 = vmatpush1.msra.mxu0 %v519
    %1139 = vmatprep.subr.mxu0 %v524
    %1140 = vmatpush1.msra.mxu0 %v523
    %1141 = vmatprep.subr.mxu0 0.0
    %1142 = vmatpush1.msra.mxu0 0.0
    %1143 = vmatprep.subr.mxu0 0.0
    %1144 = vmatpush1.msra.mxu0 0.0
    %1145 = vmatprep.subr.mxu0 0.0
    %1146 = vmatpush1.msra.mxu0 0.0
    %1147 = vmatprep.subr.mxu0 0.0
    %1148 = vmatpush1.msra.mxu0 0.0
    %1149 = vmatprep.subr.mxu0 0.0
    %1150 = vmatpush1.msra.mxu0 0.0
    %1151 = vmatprep.subr.mxu0 0.0
    %1152 = vmatpush1.msra.mxu0 0.0
    %1153 = vmatprep.subr.mxu0 0.0
    %1154 = vmatpush1.msra.mxu0 0.0
    %1155 = vmatprep.subr.mxu0 0.0
    %1156 = vmatpush1.msra.mxu0 0.0
    %1157 = vmatprep.subr.mxu0 0.0
    %1158 = vmatpush1.msra.mxu0 0.0
    %1159 = vmatprep.subr.mxu0 0.0
    %1160 = vmatpush1.msra.mxu0 0.0
    %1161 = vmatprep.subr.mxu0 0.0
    %1162 = vmatpush1.msra.mxu0 0.0
    %1163 = vmatprep.subr.mxu0 0.0
    %1164 = vmatpush1.msra.mxu0 0.0
    %1165 = vmatprep.subr.mxu0 0.0
    %1166 = vmatpush1.msra.mxu0 0.0
    %1167 = vmatprep.subr.mxu0 0.0
    %1168 = vmatpush1.msra.mxu0 0.0
    %1169 = vmatprep.subr.mxu0 0.0
    %1170 = vmatpush1.msra.mxu0 0.0
    %1171 = vmatprep.subr.mxu0 0.0
    %1172 = vmatpush1.msra.mxu0 0.0
    %1173 = vmatprep.mubr.f32.mxu0 0.0
    %1174 = vmatmul.mubr.f32.gmra.mrb[0].mxu0 %v1030
    %v1175 = vpop.f32.mrb[0].mxu0
    %v1176 = vadd.f32 0.0, %v1175
    %v1177 = vpop.f32.mrb[0].mxu0
    %v1178 = vadd.f32 0.0, %v1177
    %1179 = vdwg.mxu0
    %v1180 = vadd.f32 %v1034, %v1105
    %v1181 = vadd.f32 %v1035, %v1107
    %v1182 = vadd.f32 %v1036, %v1176
    %v1183 = vadd.f32 %v1037, %v1178
    %v1184 = vmul.f32 %v1180, 0.5
    %v1185 = vtanh.pop %v1184
    %v1186 = vmul.f32 %v1185, 0.5
    %v1187 = vadd.f32 %v1186, 0.5
    %v1188 = vmul.f32 %v1181, 0.5
    %v1189 = vtanh.pop %v1188
    %v1190 = vmul.f32 %v1189, 0.5
    %v1191 = vadd.f32 %v1190, 0.5
    %v1192 = vtanh.pop %v1182
    %v1193 = vmul.f32 %v1183, 0.5
    %v1194 = vtanh.pop %v1193
    %v1195 = vmul.f32 %v1194, 0.5
    %v1196 = vadd.f32 %v1195, 0.5
    %v1197 = vmul.f32 %v1191, %v1028
    %v1198 = vmul.f32 %v1187, %v1192
    %v1199 = vadd.f32 %v1197, %v1198
    %v1200 = vtanh.pop %v1199
    %v1201 = vmul.f32 %v1196, %v1200
    %s1202 = smul.u32 4, 4
    %s1203 = smul.addr %s1202, 8
    %s1204 = scalar_lea.vmem [#allocation2], %s1203
    %v1205 = vld [vmem:[%s1204] sm:$0xff]
    %v1206 = vld [vmem:[%s1204 + $0x8] sm:$0xff]
    %v1207 = vld [vmem:[%s1204 + $0x10] sm:$0xff]
    %v1208 = vld [vmem:[%s1204 + $0x18] sm:$0xff]
    %1209 = vmatprep.subr.mxu0 %v462
    %1210 = vmatpush1.msra.mxu0 %v461
    %1211 = vmatprep.subr.mxu0 %v466
    %1212 = vmatpush1.msra.mxu0 %v465
    %1213 = vmatprep.subr.mxu0 %v470
    %1214 = vmatpush1.msra.mxu0 %v469
    %1215 = vmatprep.subr.mxu0 %v474
    %1216 = vmatpush1.msra.mxu0 %v473
    %1217 = vmatprep.subr.mxu0 %v478
    %1218 = vmatpush1.msra.mxu0 %v477
    %1219 = vmatprep.subr.mxu0 %v482
    %1220 = vmatpush1.msra.mxu0 %v481
    %1221 = vmatprep.subr.mxu0 %v486
    %1222 = vmatpush1.msra.mxu0 %v485
    %1223 = vmatprep.subr.mxu0 %v490
    %1224 = vmatpush1.msra.mxu0 %v489
    %1225 = vmatprep.subr.mxu0 %v494
    %1226 = vmatpush1.msra.mxu0 %v493
    %1227 = vmatprep.subr.mxu0 %v498
    %1228 = vmatpush1.msra.mxu0 %v497
    %1229 = vmatprep.subr.mxu0 %v502
    %1230 = vmatpush1.msra.mxu0 %v501
    %1231 = vmatprep.subr.mxu0 %v506
    %1232 = vmatpush1.msra.mxu0 %v505
    %1233 = vmatprep.subr.mxu0 %v510
    %1234 = vmatpush1.msra.mxu0 %v509
    %1235 = vmatprep.subr.mxu0 %v514
    %1236 = vmatpush1.msra.mxu0 %v513
    %1237 = vmatprep.subr.mxu0 %v518
    %1238 = vmatpush1.msra.mxu0 %v517
    %1239 = vmatprep.subr.mxu0 %v522
    %1240 = vmatpush1.msra.mxu0 %v521
    %1241 = vmatprep.subr.mxu0 0.0
    %1242 = vmatpush1.msra.mxu0 0.0
    %1243 = vmatprep.subr.mxu0 0.0
    %1244 = vmatpush1.msra.mxu0 0.0
    %1245 = vmatprep.subr.mxu0 0.0
    %1246 = vmatpush1.msra.mxu0 0.0
    %1247 = vmatprep.subr.mxu0 0.0
    %1248 = vmatpush1.msra.mxu0 0.0
    %1249 = vmatprep.subr.mxu0 0.0
    %1250 = vmatpush1.msra.mxu0 0.0
    %1251 = vmatprep.subr.mxu0 0.0
    %1252 = vmatpush1.msra.mxu0 0.0
    %1253 = vmatprep.subr.mxu0 0.0
    %1254 = vmatpush1.msra.mxu0 0.0
    %1255 = vmatprep.subr.mxu0 0.0
    %1256 = vmatpush1.msra.mxu0 0.0
    %1257 = vmatprep.subr.mxu0 0.0
    %1258 = vmatpush1.msra.mxu0 0.0
    %1259 = vmatprep.subr.mxu0 0.0
    %1260 = vmatpush1.msra.mxu0 0.0
    %1261 = vmatprep.subr.mxu0 0.0
    %1262 = vmatpush1.msra.mxu0 0.0
    %1263 = vmatprep.subr.mxu0 0.0
    %1264 = vmatpush1.msra.mxu0 0.0
    %1265 = vmatprep.subr.mxu0 0.0
    %1266 = vmatpush1.msra.mxu0 0.0
    %1267 = vmatprep.subr.mxu0 0.0
    %1268 = vmatpush1.msra.mxu0 0.0
    %1269 = vmatprep.subr.mxu0 0.0
    %1270 = vmatpush1.msra.mxu0 0.0
    %1271 = vmatprep.subr.mxu0 0.0
    %1272 = vmatpush1.msra.mxu0 0.0
    %1273 = vmatprep.mubr.f32.mxu0 0.0
    %1274 = vmatmul.mubr.f32.gmra.mrb[0].mxu0 %v1201
    %v1275 = vpop.f32.mrb[0].mxu0
    %v1276 = vadd.f32 0.0, %v1275
    %v1277 = vpop.f32.mrb[0].mxu0
    %v1278 = vadd.f32 0.0, %v1277
    %1279 = vdwg.mxu0
    %1280 = vmatprep.subr.mxu0 %v464
    %1281 = vmatpush1.msra.mxu0 %v463
    %1282 = vmatprep.subr.mxu0 %v468
    %1283 = vmatpush1.msra.mxu0 %v467
    %1284 = vmatprep.subr.mxu0 %v472
    %1285 = vmatpush1.msra.mxu0 %v471
    %1286 = vmatprep.subr.mxu0 %v476
    %1287 = vmatpush1.msra.mxu0 %v475
    %1288 = vmatprep.subr.mxu0 %v480
    %1289 = vmatpush1.msra.mxu0 %v479
    %1290 = vmatprep.subr.mxu0 %v484
    %1291 = vmatpush1.msra.mxu0 %v483
    %1292 = vmatprep.subr.mxu0 %v488
    %1293 = vmatpush1.msra.mxu0 %v487
    %1294 = vmatprep.subr.mxu0 %v492
    %1295 = vmatpush1.msra.mxu0 %v491
    %1296 = vmatprep.subr.mxu0 %v496
    %1297 = vmatpush1.msra.mxu0 %v495
    %1298 = vmatprep.subr.mxu0 %v500
    %1299 = vmatpush1.msra.mxu0 %v499
    %1300 = vmatprep.subr.mxu0 %v504
    %1301 = vmatpush1.msra.mxu0 %v503
    %1302 = vmatprep.subr.mxu0 %v508
    %1303 = vmatpush1.msra.mxu0 %v507
    %1304 = vmatprep.subr.mxu0 %v512
    %1305 = vmatpush1.msra.mxu0 %v511
    %1306 = vmatprep.subr.mxu0 %v516
    %1307 = vmatpush1.msra.mxu0 %v515
    %1308 = vmatprep.subr.mxu0 %v520
    %1309 = vmatpush1.msra.mxu0 %v519
    %1310 = vmatprep.subr.mxu0 %v524
    %1311 = vmatpush1.msra.mxu0 %v523
    %1312 = vmatprep.subr.mxu0 0.0
    %1313 = vmatpush1.msra.mxu0 0.0
    %1314 = vmatprep.subr.mxu0 0.0
    %1315 = vmatpush1.msra.mxu0 0.0
    %1316 = vmatprep.subr.mxu0 0.0
    %1317 = vmatpush1.msra.mxu0 0.0
    %1318 = vmatprep.subr.mxu0 0.0
    %1319 = vmatpush1.msra.mxu0 0.0
    %1320 = vmatprep.subr.mxu0 0.0
    %1321 = vmatpush1.msra.mxu0 0.0
    %1322 = vmatprep.subr.mxu0 0.0
    %1323 = vmatpush1.msra.mxu0 0.0
    %1324 = vmatprep.subr.mxu0 0.0
    %1325 = vmatpush1.msra.mxu0 0.0
    %1326 = vmatprep.subr.mxu0 0.0
    %1327 = vmatpush1.msra.mxu0 0.0
    %1328 = vmatprep.subr.mxu0 0.0
    %1329 = vmatpush1.msra.mxu0 0.0
    %1330 = vmatprep.subr.mxu0 0.0
    %1331 = vmatpush1.msra.mxu0 0.0
    %1332 = vmatprep.subr.mxu0 0.0
    %1333 = vmatpush1.msra.mxu0 0.0
    %1334 = vmatprep.subr.mxu0 0.0
    %1335 = vmatpush1.msra.mxu0 0.0
    %1336 = vmatprep.subr.mxu0 0.0
    %1337 = vmatpush1.msra.mxu0 0.0
    %1338 = vmatprep.subr.mxu0 0.0
    %1339 = vmatpush1.msra.mxu0 0.0
    %1340 = vmatprep.subr.mxu0 0.0
    %1341 = vmatpush1.msra.mxu0 0.0
    %1342 = vmatprep.subr.mxu0 0.0
    %1343 = vmatpush1.msra.mxu0 0.0
    %1344 = vmatprep.mubr.f32.mxu0 0.0
    %1345 = vmatmul.mubr.f32.gmra.mrb[0].mxu0 %v1201
    %v1346 = vpop.f32.mrb[0].mxu0
    %v1347 = vadd.f32 0.0, %v1346
    %v1348 = vpop.f32.mrb[0].mxu0
    %v1349 = vadd.f32 0.0, %v1348
    %1350 = vdwg.mxu0
    %v1351 = vadd.f32 %v1205, %v1276
    %v1352 = vadd.f32 %v1206, %v1278
    %v1353 = vadd.f32 %v1207, %v1347
    %v1354 = vadd.f32 %v1208, %v1349
    %v1355 = vmul.f32 %v1351, 0.5
    %v1356 = vtanh.pop %v1355
    %v1357 = vmul.f32 %v1356, 0.5
    %v1358 = vadd.f32 %v1357, 0.5
    %v1359 = vmul.f32 %v1352, 0.5
    %v1360 = vtanh.pop %v1359
    %v1361 = vmul.f32 %v1360, 0.5
    %v1362 = vadd.f32 %v1361, 0.5
    %v1363 = vtanh.pop %v1353
    %v1364 = vmul.f32 %v1354, 0.5
    %v1365 = vtanh.pop %v1364
    %v1366 = vmul.f32 %v1365, 0.5
    %v1367 = vadd.f32 %v1366, 0.5
    %v1368 = vmul.f32 %v1362, %v1199
    %v1369 = vmul.f32 %v1358, %v1363
    %v1370 = vadd.f32 %v1368, %v1369
    %v1371 = vtanh.pop %v1370
    %v1372 = vmul.f32 %v1367, %v1371
    %s1373 = smul.u32 5, 4
    %s1374 = smul.addr %s1373, 8
    %s1375 = scalar_lea.vmem [#allocation2], %s1374
    %v1376 = vld [vmem:[%s1375] sm:$0xff]
    %v1377 = vld [vmem:[%s1375 + $0x8] sm:$0xff]
    %v1378 = vld [vmem:[%s1375 + $0x10] sm:$0xff]
    %v1379 = vld [vmem:[%s1375 + $0x18] sm:$0xff]
    %1380 = vmatprep.subr.mxu0 %v462
    %1381 = vmatpush1.msra.mxu0 %v461
    %1382 = vmatprep.subr.mxu0 %v466
    %1383 = vmatpush1.msra.mxu0 %v465
    %1384 = vmatprep.subr.mxu0 %v470
    %1385 = vmatpush1.msra.mxu0 %v469
    %1386 = vmatprep.subr.mxu0 %v474
    %1387 = vmatpush1.msra.mxu0 %v473
    %1388 = vmatprep.subr.mxu0 %v478
    %1389 = vmatpush1.msra.mxu0 %v477
    %1390 = vmatprep.subr.mxu0 %v482
    %1391 = vmatpush1.msra.mxu0 %v481
    %1392 = vmatprep.subr.mxu0 %v486
    %1393 = vmatpush1.msra.mxu0 %v485
    %1394 = vmatprep.subr.mxu0 %v490
    %1395 = vmatpush1.msra.mxu0 %v489
    %1396 = vmatprep.subr.mxu0 %v494
    %1397 = vmatpush1.msra.mxu0 %v493
    %1398 = vmatprep.subr.mxu0 %v498
    %1399 = vmatpush1.msra.mxu0 %v497
    %1400 = vmatprep.subr.mxu0 %v502
    %1401 = vmatpush1.msra.mxu0 %v501
    %1402 = vmatprep.subr.mxu0 %v506
    %1403 = vmatpush1.msra.mxu0 %v505
    %1404 = vmatprep.subr.mxu0 %v510
    %1405 = vmatpush1.msra.mxu0 %v509
    %1406 = vmatprep.subr.mxu0 %v514
    %1407 = vmatpush1.msra.mxu0 %v513
    %1408 = vmatprep.subr.mxu0 %v518
    %1409 = vmatpush1.msra.mxu0 %v517
    %1410 = vmatprep.subr.mxu0 %v522
    %1411 = vmatpush1.msra.mxu0 %v521
    %1412 = vmatprep.subr.mxu0 0.0
    %1413 = vmatpush1.msra.mxu0 0.0
    %1414 = vmatprep.subr.mxu0 0.0
    %1415 = vmatpush1.msra.mxu0 0.0
    %1416 = vmatprep.subr.mxu0 0.0
    %1417 = vmatpush1.msra.mxu0 0.0
    %1418 = vmatprep.subr.mxu0 0.0
    %1419 = vmatpush1.msra.mxu0 0.0
    %1420 = vmatprep.subr.mxu0 0.0
    %1421 = vmatpush1.msra.mxu0 0.0
    %1422 = vmatprep.subr.mxu0 0.0
    %1423 = vmatpush1.msra.mxu0 0.0
    %1424 = vmatprep.subr.mxu0 0.0
    %1425 = vmatpush1.msra.mxu0 0.0
    %1426 = vmatprep.subr.mxu0 0.0
    %1427 = vmatpush1.msra.mxu0 0.0
    %1428 = vmatprep.subr.mxu0 0.0
    %1429 = vmatpush1.msra.mxu0 0.0
    %1430 = vmatprep.subr.mxu0 0.0
    %1431 = vmatpush1.msra.mxu0 0.0
    %1432 = vmatprep.subr.mxu0 0.0
    %1433 = vmatpush1.msra.mxu0 0.0
    %1434 = vmatprep.subr.mxu0 0.0
    %1435 = vmatpush1.msra.mxu0 0.0
    %1436 = vmatprep.subr.mxu0 0.0
    %1437 = vmatpush1.msra.mxu0 0.0
    %1438 = vmatprep.subr.mxu0 0.0
    %1439 = vmatpush1.msra.mxu0 0.0
    %1440 = vmatprep.subr.mxu0 0.0
    %1441 = vmatpush1.msra.mxu0 0.0
    %1442 = vmatprep.subr.mxu0 0.0
    %1443 = vmatpush1.msra.mxu0 0.0
    %1444 = vmatprep.mubr.f32.mxu0 0.0
    %1445 = vmatmul.mubr.f32.gmra.mrb[0].mxu0 %v1372
    %v1446 = vpop.f32.mrb[0].mxu0
    %v1447 = vadd.f32 0.0, %v1446
    %v1448 = vpop.f32.mrb[0].mxu0
    %v1449 = vadd.f32 0.0, %v1448
    %1450 = vdwg.mxu0
    %1451 = vmatprep.subr.mxu0 %v464
    %1452 = vmatpush1.msra.mxu0 %v463
    %1453 = vmatprep.subr.mxu0 %v468
    %1454 = vmatpush1.msra.mxu0 %v467
    %1455 = vmatprep.subr.mxu0 %v472
    %1456 = vmatpush1.msra.mxu0 %v471
    %1457 = vmatprep.subr.mxu0 %v476
    %1458 = vmatpush1.msra.mxu0 %v475
    %1459 = vmatprep.subr.mxu0 %v480
    %1460 = vmatpush1.msra.mxu0 %v479
    %1461 = vmatprep.subr.mxu0 %v484
    %1462 = vmatpush1.msra.mxu0 %v483
    %1463 = vmatprep.subr.mxu0 %v488
    %1464 = vmatpush1.msra.mxu0 %v487
    %1465 = vmatprep.subr.mxu0 %v492
    %1466 = vmatpush1.msra.mxu0 %v491
    %1467 = vmatprep.subr.mxu0 %v496
    %1468 = vmatpush1.msra.mxu0 %v495
    %1469 = vmatprep.subr.mxu0 %v500
    %1470 = vmatpush1.msra.mxu0 %v499
    %1471 = vmatprep.subr.mxu0 %v504
    %1472 = vmatpush1.msra.mxu0 %v503
    %1473 = vmatprep.subr.mxu0 %v508
    %1474 = vmatpush1.msra.mxu0 %v507
    %1475 = vmatprep.subr.mxu0 %v512
    %1476 = vmatpush1.msra.mxu0 %v511
    %1477 = vmatprep.subr.mxu0 %v516
    %1478 = vmatpush1.msra.mxu0 %v515
    %1479 = vmatprep.subr.mxu0 %v520
    %1480 = vmatpush1.msra.mxu0 %v519
    %1481 = vmatprep.subr.mxu0 %v524
    %1482 = vmatpush1.msra.mxu0 %v523
    %1483 = vmatprep.subr.mxu0 0.0
    %1484 = vmatpush1.msra.mxu0 0.0
    %1485 = vmatprep.subr.mxu0 0.0
    %1486 = vmatpush1.msra.mxu0 0.0
    %1487 = vmatprep.subr.mxu0 0.0
    %1488 = vmatpush1.msra.mxu0 0.0
    %1489 = vmatprep.subr.mxu0 0.0
    %1490 = vmatpush1.msra.mxu0 0.0
    %1491 = vmatprep.subr.mxu0 0.0
    %1492 = vmatpush1.msra.mxu0 0.0
    %1493 = vmatprep.subr.mxu0 0.0
    %1494 = vmatpush1.msra.mxu0 0.0
    %1495 = vmatprep.subr.mxu0 0.0
    %1496 = vmatpush1.msra.mxu0 0.0
    %1497 = vmatprep.subr.mxu0 0.0
    %1498 = vmatpush1.msra.mxu0 0.0
    %1499 = vmatprep.subr.mxu0 0.0
    %1500 = vmatpush1.msra.mxu0 0.0
    %1501 = vmatprep.subr.mxu0 0.0
    %1502 = vmatpush1.msra.mxu0 0.0
    %1503 = vmatprep.subr.mxu0 0.0
    %1504 = vmatpush1.msra.mxu0 0.0
    %1505 = vmatprep.subr.mxu0 0.0
    %1506 = vmatpush1.msra.mxu0 0.0
    %1507 = vmatprep.subr.mxu0 0.0
    %1508 = vmatpush1.msra.mxu0 0.0
    %1509 = vmatprep.subr.mxu0 0.0
    %1510 = vmatpush1.msra.mxu0 0.0
    %1511 = vmatprep.subr.mxu0 0.0
    %1512 = vmatpush1.msra.mxu0 0.0
    %1513 = vmatprep.subr.mxu0 0.0
    %1514 = vmatpush1.msra.mxu0 0.0
    %1515 = vmatprep.mubr.f32.mxu0 0.0
    %1516 = vmatmul.mubr.f32.gmra.mrb[0].mxu0 %v1372
    %v1517 = vpop.f32.mrb[0].mxu0
    %v1518 = vadd.f32 0.0, %v1517
    %v1519 = vpop.f32.mrb[0].mxu0
    %v1520 = vadd.f32 0.0, %v1519
    %1521 = vdwg.mxu0
    %v1522 = vadd.f32 %v1376, %v1447
    %v1523 = vadd.f32 %v1377, %v1449
    %v1524 = vadd.f32 %v1378, %v1518
    %v1525 = vadd.f32 %v1379, %v1520
    %v1526 = vmul.f32 %v1522, 0.5
    %v1527 = vtanh.pop %v1526
    %v1528 = vmul.f32 %v1527, 0.5
    %v1529 = vadd.f32 %v1528, 0.5
    %v1530 = vmul.f32 %v1523, 0.5
    %v1531 = vtanh.pop %v1530
    %v1532 = vmul.f32 %v1531, 0.5
    %v1533 = vadd.f32 %v1532, 0.5
    %v1534 = vtanh.pop %v1524
    %v1535 = vmul.f32 %v1525, 0.5
    %v1536 = vtanh.pop %v1535
    %v1537 = vmul.f32 %v1536, 0.5
    %v1538 = vadd.f32 %v1537, 0.5
    %v1539 = vmul.f32 %v1533, %v1370
    %v1540 = vmul.f32 %v1529, %v1534
    %v1541 = vadd.f32 %v1539, %v1540
    %v1542 = vtanh.pop %v1541
    %v1543 = vmul.f32 %v1538, %v1542
    %s1544 = smul.u32 6, 4
    %s1545 = smul.addr %s1544, 8
    %s1546 = scalar_lea.vmem [#allocation2], %s1545
    %v1547 = vld [vmem:[%s1546] sm:$0xff]
    %v1548 = vld [vmem:[%s1546 + $0x8] sm:$0xff]
    %v1549 = vld [vmem:[%s1546 + $0x10] sm:$0xff]
    %v1550 = vld [vmem:[%s1546 + $0x18] sm:$0xff]
    %1551 = vmatprep.subr.mxu0 %v462
    %1552 = vmatpush1.msra.mxu0 %v461
    %1553 = vmatprep.subr.mxu0 %v466
    %1554 = vmatpush1.msra.mxu0 %v465
    %1555 = vmatprep.subr.mxu0 %v470
    %1556 = vmatpush1.msra.mxu0 %v469
    %1557 = vmatprep.subr.mxu0 %v474
    %1558 = vmatpush1.msra.mxu0 %v473
    %1559 = vmatprep.subr.mxu0 %v478
    %1560 = vmatpush1.msra.mxu0 %v477
    %1561 = vmatprep.subr.mxu0 %v482
    %1562 = vmatpush1.msra.mxu0 %v481
    %1563 = vmatprep.subr.mxu0 %v486
    %1564 = vmatpush1.msra.mxu0 %v485
    %1565 = vmatprep.subr.mxu0 %v490
    %1566 = vmatpush1.msra.mxu0 %v489
    %1567 = vmatprep.subr.mxu0 %v494
    %1568 = vmatpush1.msra.mxu0 %v493
    %1569 = vmatprep.subr.mxu0 %v498
    %1570 = vmatpush1.msra.mxu0 %v497
    %1571 = vmatprep.subr.mxu0 %v502
    %1572 = vmatpush1.msra.mxu0 %v501
    %1573 = vmatprep.subr.mxu0 %v506
    %1574 = vmatpush1.msra.mxu0 %v505
    %1575 = vmatprep.subr.mxu0 %v510
    %1576 = vmatpush1.msra.mxu0 %v509
    %1577 = vmatprep.subr.mxu0 %v514
    %1578 = vmatpush1.msra.mxu0 %v513
    %1579 = vmatprep.subr.mxu0 %v518
    %1580 = vmatpush1.msra.mxu0 %v517
    %1581 = vmatprep.subr.mxu0 %v522
    %1582 = vmatpush1.msra.mxu0 %v521
    %1583 = vmatprep.subr.mxu0 0.0
    %1584 = vmatpush1.msra.mxu0 0.0
    %1585 = vmatprep.subr.mxu0 0.0
    %1586 = vmatpush1.msra.mxu0 0.0
    %1587 = vmatprep.subr.mxu0 0.0
    %1588 = vmatpush1.msra.mxu0 0.0
    %1589 = vmatprep.subr.mxu0 0.0
    %1590 = vmatpush1.msra.mxu0 0.0
    %1591 = vmatprep.subr.mxu0 0.0
    %1592 = vmatpush1.msra.mxu0 0.0
    %1593 = vmatprep.subr.mxu0 0.0
    %1594 = vmatpush1.msra.mxu0 0.0
    %1595 = vmatprep.subr.mxu0 0.0
    %1596 = vmatpush1.msra.mxu0 0.0
    %1597 = vmatprep.subr.mxu0 0.0
    %1598 = vmatpush1.msra.mxu0 0.0
    %1599 = vmatprep.subr.mxu0 0.0
    %1600 = vmatpush1.msra.mxu0 0.0
    %1601 = vmatprep.subr.mxu0 0.0
    %1602 = vmatpush1.msra.mxu0 0.0
    %1603 = vmatprep.subr.mxu0 0.0
    %1604 = vmatpush1.msra.mxu0 0.0
    %1605 = vmatprep.subr.mxu0 0.0
    %1606 = vmatpush1.msra.mxu0 0.0
    %1607 = vmatprep.subr.mxu0 0.0
    %1608 = vmatpush1.msra.mxu0 0.0
    %1609 = vmatprep.subr.mxu0 0.0
    %1610 = vmatpush1.msra.mxu0 0.0
    %1611 = vmatprep.subr.mxu0 0.0
    %1612 = vmatpush1.msra.mxu0 0.0
    %1613 = vmatprep.subr.mxu0 0.0
    %1614 = vmatpush1.msra.mxu0 0.0
    %1615 = vmatprep.mubr.f32.mxu0 0.0
    %1616 = vmatmul.mubr.f32.gmra.mrb[0].mxu0 %v1543
    %v1617 = vpop.f32.mrb[0].mxu0
    %v1618 = vadd.f32 0.0, %v1617
    %v1619 = vpop.f32.mrb[0].mxu0
    %v1620 = vadd.f32 0.0, %v1619
    %1621 = vdwg.mxu0
    %1622 = vmatprep.subr.mxu0 %v464
    %1623 = vmatpush1.msra.mxu0 %v463
    %1624 = vmatprep.subr.mxu0 %v468
    %1625 = vmatpush1.msra.mxu0 %v467
    %1626 = vmatprep.subr.mxu0 %v472
    %1627 = vmatpush1.msra.mxu0 %v471
    %1628 = vmatprep.subr.mxu0 %v476
    %1629 = vmatpush1.msra.mxu0 %v475
    %1630 = vmatprep.subr.mxu0 %v480
    %1631 = vmatpush1.msra.mxu0 %v479
    %1632 = vmatprep.subr.mxu0 %v484
    %1633 = vmatpush1.msra.mxu0 %v483
    %1634 = vmatprep.subr.mxu0 %v488
    %1635 = vmatpush1.msra.mxu0 %v487
    %1636 = vmatprep.subr.mxu0 %v492
    %1637 = vmatpush1.msra.mxu0 %v491
    %1638 = vmatprep.subr.mxu0 %v496
    %1639 = vmatpush1.msra.mxu0 %v495
    %1640 = vmatprep.subr.mxu0 %v500
    %1641 = vmatpush1.msra.mxu0 %v499
    %1642 = vmatprep.subr.mxu0 %v504
    %1643 = vmatpush1.msra.mxu0 %v503
    %1644 = vmatprep.subr.mxu0 %v508
    %1645 = vmatpush1.msra.mxu0 %v507
    %1646 = vmatprep.subr.mxu0 %v512
    %1647 = vmatpush1.msra.mxu0 %v511
    %1648 = vmatprep.subr.mxu0 %v516
    %1649 = vmatpush1.msra.mxu0 %v515
    %1650 = vmatprep.subr.mxu0 %v520
    %1651 = vmatpush1.msra.mxu0 %v519
    %1652 = vmatprep.subr.mxu0 %v524
    %1653 = vmatpush1.msra.mxu0 %v523
    %1654 = vmatprep.subr.mxu0 0.0
    %1655 = vmatpush1.msra.mxu0 0.0
    %1656 = vmatprep.subr.mxu0 0.0
    %1657 = vmatpush1.msra.mxu0 0.0
    %1658 = vmatprep.subr.mxu0 0.0
    %1659 = vmatpush1.msra.mxu0 0.0
    %1660 = vmatprep.subr.mxu0 0.0
    %1661 = vmatpush1.msra.mxu0 0.0
    %1662 = vmatprep.subr.mxu0 0.0
    %1663 = vmatpush1.msra.mxu0 0.0
    %1664 = vmatprep.subr.mxu0 0.0
    %1665 = vmatpush1.msra.mxu0 0.0
    %1666 = vmatprep.subr.mxu0 0.0
    %1667 = vmatpush1.msra.mxu0 0.0
    %1668 = vmatprep.subr.mxu0 0.0
    %1669 = vmatpush1.msra.mxu0 0.0
    %1670 = vmatprep.subr.mxu0 0.0
    %1671 = vmatpush1.msra.mxu0 0.0
    %1672 = vmatprep.subr.mxu0 0.0
    %1673 = vmatpush1.msra.mxu0 0.0
    %1674 = vmatprep.subr.mxu0 0.0
    %1675 = vmatpush1.msra.mxu0 0.0
    %1676 = vmatprep.subr.mxu0 0.0
    %1677 = vmatpush1.msra.mxu0 0.0
    %1678 = vmatprep.subr.mxu0 0.0
    %1679 = vmatpush1.msra.mxu0 0.0
    %1680 = vmatprep.subr.mxu0 0.0
    %1681 = vmatpush1.msra.mxu0 0.0
    %1682 = vmatprep.subr.mxu0 0.0
    %1683 = vmatpush1.msra.mxu0 0.0
    %1684 = vmatprep.subr.mxu0 0.0
    %1685 = vmatpush1.msra.mxu0 0.0
    %1686 = vmatprep.mubr.f32.mxu0 0.0
    %1687 = vmatmul.mubr.f32.gmra.mrb[0].mxu0 %v1543
    %v1688 = vpop.f32.mrb[0].mxu0
    %v1689 = vadd.f32 0.0, %v1688
    %v1690 = vpop.f32.mrb[0].mxu0
    %v1691 = vadd.f32 0.0, %v1690
    %1692 = vdwg.mxu0
    %v1693 = vadd.f32 %v1547, %v1618
    %v1694 = vadd.f32 %v1548, %v1620
    %v1695 = vadd.f32 %v1549, %v1689
    %v1696 = vadd.f32 %v1550, %v1691
    %v1697 = vmul.f32 %v1693, 0.5
    %v1698 = vtanh.pop %v1697
    %v1699 = vmul.f32 %v1698, 0.5
    %v1700 = vadd.f32 %v1699, 0.5
    %v1701 = vmul.f32 %v1694, 0.5
    %v1702 = vtanh.pop %v1701
    %v1703 = vmul.f32 %v1702, 0.5
    %v1704 = vadd.f32 %v1703, 0.5
    %v1705 = vtanh.pop %v1695
    %v1706 = vmul.f32 %v1696, 0.5
    %v1707 = vtanh.pop %v1706
    %v1708 = vmul.f32 %v1707, 0.5
    %v1709 = vadd.f32 %v1708, 0.5
    %v1710 = vmul.f32 %v1704, %v1541
    %v1711 = vmul.f32 %v1700, %v1705
    %v1712 = vadd.f32 %v1710, %v1711
    %v1713 = vtanh.pop %v1712
    %v1714 = vmul.f32 %v1709, %v1713
    %s1715 = smul.u32 7, 4
    %s1716 = smul.addr %s1715, 8
    %s1717 = scalar_lea.vmem [#allocation2], %s1716
    %v1718 = vld [vmem:[%s1717] sm:$0xff]
    %v1719 = vld [vmem:[%s1717 + $0x8] sm:$0xff]
    %v1720 = vld [vmem:[%s1717 + $0x10] sm:$0xff]
    %v1721 = vld [vmem:[%s1717 + $0x18] sm:$0xff]
    %1722 = vmatprep.subr.mxu0 %v462
    %1723 = vmatpush1.msra.mxu0 %v461
    %1724 = vmatprep.subr.mxu0 %v466
    %1725 = vmatpush1.msra.mxu0 %v465
    %1726 = vmatprep.subr.mxu0 %v470
    %1727 = vmatpush1.msra.mxu0 %v469
    %1728 = vmatprep.subr.mxu0 %v474
    %1729 = vmatpush1.msra.mxu0 %v473
    %1730 = vmatprep.subr.mxu0 %v478
    %1731 = vmatpush1.msra.mxu0 %v477
    %1732 = vmatprep.subr.mxu0 %v482
    %1733 = vmatpush1.msra.mxu0 %v481
    %1734 = vmatprep.subr.mxu0 %v486
    %1735 = vmatpush1.msra.mxu0 %v485
    %1736 = vmatprep.subr.mxu0 %v490
    %1737 = vmatpush1.msra.mxu0 %v489
    %1738 = vmatprep.subr.mxu0 %v494
    %1739 = vmatpush1.msra.mxu0 %v493
    %1740 = vmatprep.subr.mxu0 %v498
    %1741 = vmatpush1.msra.mxu0 %v497
    %1742 = vmatprep.subr.mxu0 %v502
    %1743 = vmatpush1.msra.mxu0 %v501
    %1744 = vmatprep.subr.mxu0 %v506
    %1745 = vmatpush1.msra.mxu0 %v505
    %1746 = vmatprep.subr.mxu0 %v510
    %1747 = vmatpush1.msra.mxu0 %v509
    %1748 = vmatprep.subr.mxu0 %v514
    %1749 = vmatpush1.msra.mxu0 %v513
    %1750 = vmatprep.subr.mxu0 %v518
    %1751 = vmatpush1.msra.mxu0 %v517
    %1752 = vmatprep.subr.mxu0 %v522
    %1753 = vmatpush1.msra.mxu0 %v521
    %1754 = vmatprep.subr.mxu0 0.0
    %1755 = vmatpush1.msra.mxu0 0.0
    %1756 = vmatprep.subr.mxu0 0.0
    %1757 = vmatpush1.msra.mxu0 0.0
    %1758 = vmatprep.subr.mxu0 0.0
    %1759 = vmatpush1.msra.mxu0 0.0
    %1760 = vmatprep.subr.mxu0 0.0
    %1761 = vmatpush1.msra.mxu0 0.0
    %1762 = vmatprep.subr.mxu0 0.0
    %1763 = vmatpush1.msra.mxu0 0.0
    %1764 = vmatprep.subr.mxu0 0.0
    %1765 = vmatpush1.msra.mxu0 0.0
    %1766 = vmatprep.subr.mxu0 0.0
    %1767 = vmatpush1.msra.mxu0 0.0
    %1768 = vmatprep.subr.mxu0 0.0
    %1769 = vmatpush1.msra.mxu0 0.0
    %1770 = vmatprep.subr.mxu0 0.0
    %1771 = vmatpush1.msra.mxu0 0.0
    %1772 = vmatprep.subr.mxu0 0.0
    %1773 = vmatpush1.msra.mxu0 0.0
    %1774 = vmatprep.subr.mxu0 0.0
    %1775 = vmatpush1.msra.mxu0 0.0
    %1776 = vmatprep.subr.mxu0 0.0
    %1777 = vmatpush1.msra.mxu0 0.0
    %1778 = vmatprep.subr.mxu0 0.0
    %1779 = vmatpush1.msra.mxu0 0.0
    %1780 = vmatprep.subr.mxu0 0.0
    %1781 = vmatpush1.msra.mxu0 0.0
    %1782 = vmatprep.subr.mxu0 0.0
    %1783 = vmatpush1.msra.mxu0 0.0
    %1784 = vmatprep.subr.mxu0 0.0
    %1785 = vmatpush1.msra.mxu0 0.0
    %1786 = vmatprep.mubr.f32.mxu0 0.0
    %1787 = vmatmul.mubr.f32.gmra.mrb[0].mxu0 %v1714
    %v1788 = vpop.f32.mrb[0].mxu0
    %v1789 = vadd.f32 0.0, %v1788
    %v1790 = vpop.f32.mrb[0].mxu0
    %v1791 = vadd.f32 0.0, %v1790
    %1792 = vdwg.mxu0
    %1793 = vmatprep.subr.mxu0 %v464
    %1794 = vmatpush1.msra.mxu0 %v463
    %1795 = vmatprep.subr.mxu0 %v468
    %1796 = vmatpush1.msra.mxu0 %v467
    %1797 = vmatprep.subr.mxu0 %v472
    %1798 = vmatpush1.msra.mxu0 %v471
    %1799 = vmatprep.subr.mxu0 %v476
    %1800 = vmatpush1.msra.mxu0 %v475
    %1801 = vmatprep.subr.mxu0 %v480
    %1802 = vmatpush1.msra.mxu0 %v479
    %1803 = vmatprep.subr.mxu0 %v484
    %1804 = vmatpush1.msra.mxu0 %v483
    %1805 = vmatprep.subr.mxu0 %v488
    %1806 = vmatpush1.msra.mxu0 %v487
    %1807 = vmatprep.subr.mxu0 %v492
    %1808 = vmatpush1.msra.mxu0 %v491
    %1809 = vmatprep.subr.mxu0 %v496
    %1810 = vmatpush1.msra.mxu0 %v495
    %1811 = vmatprep.subr.mxu0 %v500
    %1812 = vmatpush1.msra.mxu0 %v499
    %1813 = vmatprep.subr.mxu0 %v504
    %1814 = vmatpush1.msra.mxu0 %v503
    %1815 = vmatprep.subr.mxu0 %v508
    %1816 = vmatpush1.msra.mxu0 %v507
    %1817 = vmatprep.subr.mxu0 %v512
    %1818 = vmatpush1.msra.mxu0 %v511
    %1819 = vmatprep.subr.mxu0 %v516
    %1820 = vmatpush1.msra.mxu0 %v515
    %1821 = vmatprep.subr.mxu0 %v520
    %1822 = vmatpush1.msra.mxu0 %v519
    %1823 = vmatprep.subr.mxu0 %v524
    %1824 = vmatpush1.msra.mxu0 %v523
    %1825 = vmatprep.subr.mxu0 0.0
    %1826 = vmatpush1.msra.mxu0 0.0
    %1827 = vmatprep.subr.mxu0 0.0
    %1828 = vmatpush1.msra.mxu0 0.0
    %1829 = vmatprep.subr.mxu0 0.0
    %1830 = vmatpush1.msra.mxu0 0.0
    %1831 = vmatprep.subr.mxu0 0.0
    %1832 = vmatpush1.msra.mxu0 0.0
    %1833 = vmatprep.subr.mxu0 0.0
    %1834 = vmatpush1.msra.mxu0 0.0
    %1835 = vmatprep.subr.mxu0 0.0
    %1836 = vmatpush1.msra.mxu0 0.0
    %1837 = vmatprep.subr.mxu0 0.0
    %1838 = vmatpush1.msra.mxu0 0.0
    %1839 = vmatprep.subr.mxu0 0.0
    %1840 = vmatpush1.msra.mxu0 0.0
    %1841 = vmatprep.subr.mxu0 0.0
    %1842 = vmatpush1.msra.mxu0 0.0
    %1843 = vmatprep.subr.mxu0 0.0
    %1844 = vmatpush1.msra.mxu0 0.0
    %1845 = vmatprep.subr.mxu0 0.0
    %1846 = vmatpush1.msra.mxu0 0.0
    %1847 = vmatprep.subr.mxu0 0.0
    %1848 = vmatpush1.msra.mxu0 0.0
    %1849 = vmatprep.subr.mxu0 0.0
    %1850 = vmatpush1.msra.mxu0 0.0
    %1851 = vmatprep.subr.mxu0 0.0
    %1852 = vmatpush1.msra.mxu0 0.0
    %1853 = vmatprep.subr.mxu0 0.0
    %1854 = vmatpush1.msra.mxu0 0.0
    %1855 = vmatprep.subr.mxu0 0.0
    %1856 = vmatpush1.msra.mxu0 0.0
    %1857 = vmatprep.mubr.f32.mxu0 0.0
    %1858 = vmatmul.mubr.f32.gmra.mrb[0].mxu0 %v1714
    %v1859 = vpop.f32.mrb[0].mxu0
    %v1860 = vadd.f32 0.0, %v1859
    %v1861 = vpop.f32.mrb[0].mxu0
    %v1862 = vadd.f32 0.0, %v1861
    %1863 = vdwg.mxu0
    %v1864 = vadd.f32 %v1718, %v1789
    %v1865 = vadd.f32 %v1719, %v1791
    %v1866 = vadd.f32 %v1720, %v1860
    %v1867 = vadd.f32 %v1721, %v1862
    %v1868 = vmul.f32 %v1864, 0.5
    %v1869 = vtanh.pop %v1868
    %v1870 = vmul.f32 %v1869, 0.5
    %v1871 = vadd.f32 %v1870, 0.5
    %v1872 = vmul.f32 %v1865, 0.5
    %v1873 = vtanh.pop %v1872
    %v1874 = vmul.f32 %v1873, 0.5
    %v1875 = vadd.f32 %v1874, 0.5
    %v1876 = vtanh.pop %v1866
    %v1877 = vmul.f32 %v1867, 0.5
    %v1878 = vtanh.pop %v1877
    %v1879 = vmul.f32 %v1878, 0.5
    %v1880 = vadd.f32 %v1879, 0.5
    %v1881 = vmul.f32 %v1875, %v1712
    %v1882 = vmul.f32 %v1871, %v1876
    %v1883 = vadd.f32 %v1881, %v1882
    %v1884 = vtanh.pop %v1883
    %v1885 = vmul.f32 %v1880, %v1884
    %1886 = vst [vmem:[#allocation13] sm:$0xff] %v1885
    %1887 = vst [vmem:[#allocation15] sm:$0xff] %v1883
    %v1888 = vld [vmem:[#allocation11] sm:$0xff]
    %v1889 = vld [vmem:[#allocation11 + $0x8] sm:$0xff]
    %v1890 = vld [vmem:[#allocation11 + $0x10] sm:$0xff]
    %v1891 = vld [vmem:[#allocation11 + $0x18] sm:$0xff]
    %v1892 = vld [vmem:[#allocation11 + $0x20] sm:$0xff]
    %v1893 = vld [vmem:[#allocation11 + $0x28] sm:$0xff]
    %v1894 = vld [vmem:[#allocation11 + $0x30] sm:$0xff]
    %v1895 = vld [vmem:[#allocation11 + $0x38] sm:$0xff]
    %v1896 = vld [vmem:[#allocation11 + $0x40] sm:$0xff]
    %v1897 = vld [vmem:[#allocation11 + $0x48] sm:$0xff]
    %v1898 = vld [vmem:[#allocation11 + $0x50] sm:$0xff]
    %v1899 = vld [vmem:[#allocation11 + $0x58] sm:$0xff]
    %v1900 = vld [vmem:[#allocation11 + $0x60] sm:$0xff]
    %v1901 = vld [vmem:[#allocation11 + $0x68] sm:$0xff]
    %v1902 = vld [vmem:[#allocation11 + $0x70] sm:$0xff]
    %v1903 = vld [vmem:[#allocation11 + $0x78] sm:$0xff]
    %v1904 = vld [vmem:[%s5] sm:$0x1]
    %v1906 = vlaneseq
    %v1907 = vshrl.u32 %v1906, 7
    %v1908 = vsub.s32 0, %v1907
    %v1909 = vrot.slane %v1904, %v1908
    %1911 = vmatprep.subr.mxu0 0.0
    %1912 = vmatpush1.msra.mxu0 %v1888
    %1913 = vmatprep.subr.mxu0 0.0
    %1914 = vmatpush1.msra.mxu0 %v1889
    %1915 = vmatprep.subr.mxu0 0.0
    %1916 = vmatpush1.msra.mxu0 %v1890
    %1917 = vmatprep.subr.mxu0 0.0
    %1918 = vmatpush1.msra.mxu0 %v1891
    %1919 = vmatprep.subr.mxu0 0.0
    %1920 = vmatpush1.msra.mxu0 %v1892
    %1921 = vmatprep.subr.mxu0 0.0
    %1922 = vmatpush1.msra.mxu0 %v1893
    %1923 = vmatprep.subr.mxu0 0.0
    %1924 = vmatpush1.msra.mxu0 %v1894
    %1925 = vmatprep.subr.mxu0 0.0
    %1926 = vmatpush1.msra.mxu0 %v1895
    %1927 = vmatprep.subr.mxu0 0.0
    %1928 = vmatpush1.msra.mxu0 %v1896
    %1929 = vmatprep.subr.mxu0 0.0
    %1930 = vmatpush1.msra.mxu0 %v1897
    %1931 = vmatprep.subr.mxu0 0.0
    %1932 = vmatpush1.msra.mxu0 %v1898
    %1933 = vmatprep.subr.mxu0 0.0
    %1934 = vmatpush1.msra.mxu0 %v1899
    %1935 = vmatprep.subr.mxu0 0.0
    %1936 = vmatpush1.msra.mxu0 %v1900
    %1937 = vmatprep.subr.mxu0 0.0
    %1938 = vmatpush1.msra.mxu0 %v1901
    %1939 = vmatprep.subr.mxu0 0.0
    %1940 = vmatpush1.msra.mxu0 %v1902
    %1941 = vmatprep.subr.mxu0 0.0
    %1942 = vmatpush1.msra.mxu0 %v1903
    %1943 = vmatprep.subr.mxu0 0.0
    %1944 = vmatpush1.msra.mxu0 0.0
    %1945 = vmatprep.subr.mxu0 0.0
    %1946 = vmatpush1.msra.mxu0 0.0
    %1947 = vmatprep.subr.mxu0 0.0
    %1948 = vmatpush1.msra.mxu0 0.0
    %1949 = vmatprep.subr.mxu0 0.0
    %1950 = vmatpush1.msra.mxu0 0.0
    %1951 = vmatprep.subr.mxu0 0.0
    %1952 = vmatpush1.msra.mxu0 0.0
    %1953 = vmatprep.subr.mxu0 0.0
    %1954 = vmatpush1.msra.mxu0 0.0
    %1955 = vmatprep.subr.mxu0 0.0
    %1956 = vmatpush1.msra.mxu0 0.0
    %1957 = vmatprep.subr.mxu0 0.0
    %1958 = vmatpush1.msra.mxu0 0.0
    %1959 = vmatprep.subr.mxu0 0.0
    %1960 = vmatpush1.msra.mxu0 0.0
    %1961 = vmatprep.subr.mxu0 0.0
    %1962 = vmatpush1.msra.mxu0 0.0
    %1963 = vmatprep.subr.mxu0 0.0
    %1964 = vmatpush1.msra.mxu0 0.0
    %1965 = vmatprep.subr.mxu0 0.0
    %1966 = vmatpush1.msra.mxu0 0.0
    %1967 = vmatprep.subr.mxu0 0.0
    %1968 = vmatpush1.msra.mxu0 0.0
    %1969 = vmatprep.subr.mxu0 0.0
    %1970 = vmatpush1.msra.mxu0 0.0
    %1971 = vmatprep.subr.mxu0 0.0
    %1972 = vmatpush1.msra.mxu0 0.0
    %1973 = vmatprep.subr.mxu0 0.0
    %1974 = vmatpush1.msra.mxu0 0.0
    %1975 = vmatprep.mubr.f32.mxu0 0.0
    %1976 = vmatmul.mubr.f32.gmra.mrb[0].mxu0 %v1885
    %v1977 = vpop.f32.mrb[0].mxu0
    %v1978 = vadd.f32 %v1909, %v1977
    %v1979 = vpop.f32.mrb[0].mxu0
    %1980 = vdwg.mxu0
    %1981 = vst [vmem:[#allocation12] sm:$0xff] %v1978
    // Predicated region
    $region54: #{tpu_custom_call.1} parent=1 // pred_check
      _
    $region55: #{tpu_custom_call.1} parent=1 // pred_check_branch
      %1983 = sbr.rel (0) target = $region57
    $region56: #{tpu_custom_call.1} parent=1 // pred_region
      %s1985 = ssub.s32 128, 128
      %1986 = vsyncadd [#allocation5], %s1985
      %s1988 = sshll.u32 [#allocation12], 4
      %s1989 = int_to_ptr.vmem [resolvable:$true] %s1988
      %1991 = dma.vmem_to_hbm [thread:$0]  %s1989, 128, %s8, [#allocation5]
    $region57: #{tpu_custom_call.1} parent=1 // pred_fallthru
      _
    // Predicated region
    $region58: #{tpu_custom_call.1} parent=1 // pred_check
      _
    $region59: #{tpu_custom_call.1} parent=1 // pred_check_branch
      %1993 = sbr.rel (0) target = $region61
    $region60: #{tpu_custom_call.1} parent=1 // pred_region
      %s1995 = ssub.s32 128, 128
      %1996 = vsyncadd [#allocation14], %s1995
      %s1998 = sshll.u32 [#allocation13], 4
      %s1999 = int_to_ptr.vmem [resolvable:$true] %s1998
      %2001 = dma.vmem_to_hbm [thread:$0]  %s1999, 128, %s9, [#allocation14]
    $region61: #{tpu_custom_call.1} parent=1 // pred_fallthru
      _
    // Predicated region
    $region62: #{tpu_custom_call.1} parent=1 // pred_check
      _
    $region63: #{tpu_custom_call.1} parent=1 // pred_check_branch
      %2003 = sbr.rel (0) target = $region65
    $region64: #{tpu_custom_call.1} parent=1 // pred_region
      %s2005 = ssub.s32 128, 128
      %2006 = vsyncadd [#allocation14], %s2005
      %s2008 = sshll.u32 [#allocation15], 4
      %s2009 = int_to_ptr.vmem [resolvable:$true] %s2008
      %2011 = dma.vmem_to_hbm [thread:$0]  %s2009, 128, %s10, [#allocation14]
    $region65: #{tpu_custom_call.1} parent=1 // pred_fallthru
      _
    // Predicated region
    $region66: #{tpu_custom_call.1} parent=1 // pred_check
      _
    $region67: #{tpu_custom_call.1} parent=1 // pred_check_branch
      %2013 = sbr.rel (0) target = $region69
    $region68: #{tpu_custom_call.1} parent=1 // pred_region
      %2014 = dma.done [#allocation5], 128
    $region69: #{tpu_custom_call.1} parent=1 // pred_fallthru
      _
    // Predicated region
    $region70: #{tpu_custom_call.1} parent=1 // pred_check
      _
    $region71: #{tpu_custom_call.1} parent=1 // pred_check_branch
      %2016 = sbr.rel (0) target = $region73
    $region72: #{tpu_custom_call.1} parent=1 // pred_region
      %2017 = dma.done [#allocation14], 128
    $region73: #{tpu_custom_call.1} parent=1 // pred_fallthru
      _
    // Predicated region
    $region74: #{tpu_custom_call.1} parent=1 // pred_check
      _
    $region75: #{tpu_custom_call.1} parent=1 // pred_check_branch
      %2019 = sbr.rel (0) target = $region77
    $region76: #{tpu_custom_call.1} parent=1 // pred_region
      %2020 = dma.done [#allocation14], 128
    $region77: #{tpu_custom_call.1} parent=1 // pred_fallthru
      _
    %2021 = vsyncpa [#allocation4], 1
    %2022 = vsyncpa [#allocation7], 1
    %2023 = vsyncpa [#allocation10], 1
    %2024 = vsyncpa [#allocation5], 1
    %2025 = vsyncpa [#allocation14], 1

</llo_original>
